<compile_context>
chip_gen: v7x
topology: tpu7x:2x2x1
jax: 0.10.0
libtpu: 0.0.40
codegen_flags: <defaults>
</compile_context>

<pallas_src>
import functools

import jax
import jax.numpy as jnp
from jax.experimental import pallas as pl
from jax.experimental.pallas import tpu as pltpu


def block_kernel(x_ref, n1w_ref, n2w_ref, qkv_w_ref, proj_w_ref, mlp_w1_ref, mlp_w2_ref,
                 o_ref, *, batch_tile, seq_len, num_heads, head_dim, eps):
    Bt, L = batch_tile, seq_len
    D = num_heads * head_dim

    # (Bt, L, D) -> (Bt*L, D): every dense matmul sees M = Bt*L rows.
    x = x_ref[...].astype(jnp.float32).reshape(Bt * L, D)

    n1w = n1w_ref[...].astype(jnp.float32)          # (1, D)
    n2w = n2w_ref[...].astype(jnp.float32)          # (1, D)

    # Weights arrive already in bf16 (cast once in the wrapper); scale folded into q-cols.
    qkv_w = qkv_w_ref[...]                          # (D, 3D)  bf16
    proj_w = proj_w_ref[...]                        # (D, D)   bf16
    w1 = mlp_w1_ref[...]                            # (D, H)   bf16
    w2 = mlp_w2_ref[...]                            # (H, D)   bf16

    def layer_norm(v, w):
        # f32 statistics; bias=False -> no bias term.
        mu = jnp.mean(v, axis=-1, keepdims=True)
        var = jnp.mean((v - mu) ** 2, axis=-1, keepdims=True)
        return (v - mu) * jax.lax.rsqrt(var + eps) * w

    # --------------- Attention branch ---------------
    h = layer_norm(x, n1w)                                                        # (Bt*L, D) f32
    qkv = jnp.dot(h.astype(jnp.bfloat16), qkv_w,
                  preferred_element_type=jnp.float32)                             # (Bt*L, 3D) f32
    # Cast to bf16 immediately (halves widest live activation); view as (Bt, L, 3D).
    qkv_bf = qkv.astype(jnp.bfloat16).reshape(Bt, L, 3 * D)

    head_outs = []
    for hh in range(num_heads):
        c0 = hh * head_dim
        qh = qkv_bf[:, :, c0:c0 + head_dim]                                       # (Bt, L, hd)
        kh = qkv_bf[:, :, D + c0:D + c0 + head_dim]                               # (Bt, L, hd)
        vh = qkv_bf[:, :, 2 * D + c0:2 * D + c0 + head_dim]                       # (Bt, L, hd)

        # Batched over Bt: QK^T contracting over head_dim (no K^T materialization).
        s = jnp.einsum('bqd,bkd->bqk', qh, kh,
                       preferred_element_type=jnp.float32)                        # (Bt, L, L) f32
        s = s - jnp.max(s, axis=-1, keepdims=True)
        p = jnp.exp(s)
        inv = pl.reciprocal(jnp.sum(p, axis=-1, keepdims=True), approx=True)      # EUP slot
        p = (p * inv).astype(jnp.bfloat16)
        o_h = jnp.einsum('bqk,bkd->bqd', p, vh,
                         preferred_element_type=jnp.float32)                      # (Bt, L, hd)
        head_outs.append(o_h.astype(jnp.bfloat16))

    # Lane-concat of per-head outputs (hd-aligned halves of a vreg) -> (Bt*L, D) bf16.
    attn_cat = jnp.concatenate(head_outs, axis=-1).reshape(Bt * L, D)
    attn_out = jnp.dot(attn_cat, proj_w, preferred_element_type=jnp.float32)      # (Bt*L, D) f32

    x1 = x + attn_out                                                             # residual, f32

    # --------------- MLP branch ---------------
    h2 = layer_norm(x1, n2w)                                                      # (Bt*L, D) f32
    hid = jnp.dot(h2.astype(jnp.bfloat16), w1,
                  preferred_element_type=jnp.float32)                             # (Bt*L, H) f32
    # exact (erf-based) GELU in f32, matching torch.nn.GELU() default
    hid = 0.5 * hid * (1.0 + jax.lax.erf(hid * (2.0 ** -0.5)))
    mlp_out = jnp.dot(hid.astype(jnp.bfloat16), w2,
                      preferred_element_type=jnp.float32)                         # (Bt*L, D) f32

    y = x1 + mlp_out
    o_ref[...] = y.reshape(Bt, L, D).astype(o_ref.dtype)


def _pick_batch_tile(B, L, *, max_rows=1024, target_steps=4):
    """Largest divisor Bt of B with Bt*L <= max_rows while keeping >= min(target_steps, B)
    grid steps, so the input/output DMAs pipeline behind compute and the 'parallel' batch
    axis gives both v7x TensorCores work."""
    min_steps = min(target_steps, B)
    best = 1
    for cand in range(1, B + 1):
        if B % cand:
            continue
        if cand * L <= max_rows and (B // cand) >= min_steps:
            best = cand
    return best


def block_forward(x, params, *, head_dim=64, eps=1e-6):
    B, L, D = x.shape
    num_heads = D // head_dim
    H = params["mlp_w1"].shape[1]
    scale = head_dim ** -0.5

    Bt = _pick_batch_tile(B, L)
    grid = (B // Bt,)

    # Fold 1/sqrt(head_dim) into the q-columns of the QKV weight (one-time host cost), then
    # store all weights in bf16: halves HBM/VMEM weight traffic; MXU accumulates in f32.
    qkv_w = params["qkv_w"].at[:, :D].multiply(scale).astype(jnp.bfloat16)
    proj_w = params["proj_w"].astype(jnp.bfloat16)
    mlp_w1 = params["mlp_w1"].astype(jnp.bfloat16)
    mlp_w2 = params["mlp_w2"].astype(jnp.bfloat16)

    kernel = functools.partial(block_kernel, batch_tile=Bt, seq_len=L,
                               num_heads=num_heads, head_dim=head_dim, eps=eps)

    return pl.pallas_call(
        kernel,
        out_shape=jax.ShapeDtypeStruct((B, L, D), x.dtype),
        grid=grid,
        in_specs=[
            pl.BlockSpec((Bt, L, D), lambda b: (b, 0, 0)),      # x (Bt batch elems per step)
            pl.BlockSpec((1, D), lambda b: (0, 0)),             # norm1 weight (f32)
            pl.BlockSpec((1, D), lambda b: (0, 0)),             # norm2 weight (f32)
            pl.BlockSpec((D, 3 * D), lambda b: (0, 0)),         # qkv weight (bf16, q-scaled)
            pl.BlockSpec((D, D), lambda b: (0, 0)),             # attn out proj weight (bf16)
            pl.BlockSpec((D, H), lambda b: (0, 0)),             # mlp l1 weight (bf16)
            pl.BlockSpec((H, D), lambda b: (0, 0)),             # mlp l2 weight (bf16)
        ],
        out_specs=pl.BlockSpec((Bt, L, D), lambda b: (b, 0, 0)),
        compiler_params=pltpu.CompilerParams(
            dimension_semantics=("parallel",),
            # <= 48 MiB is safe on v7x (64 MiB physical); raise toward 96 MiB on v5e/v6e
            # (128 MiB physical) if D/H/Bt grow.
            vmem_limit_bytes=48 * 1024 * 1024,
        ),
    )(x, params["norm1_w"], params["norm2_w"], qkv_w, proj_w, mlp_w1, mlp_w2)


def block_reference(x, params, *, head_dim=64, eps=1e-6):
    """Pure-JAX f32 reference of the PyTorch Block forward (mask=None)."""
    B, L, D = x.shape
    num_heads = D // head_dim
    scale = head_dim ** -0.5

    def ln(v, w):
        mu = jnp.mean(v, axis=-1, keepdims=True)
        var = jnp.mean((v - mu) ** 2, axis=-1, keepdims=True)
        return (v - mu) * jax.lax.rsqrt(var + eps) * w

    h = ln(x, params["norm1_w"][0])
    qkv = h @ params["qkv_w"]
    q, k, v = jnp.split(qkv, 3, axis=-1)
    q = q.reshape(B, L, num_heads, head_dim).transpose(0, 2, 1, 3)
    k = k.reshape(B, L, num_heads, head_dim).transpose(0, 2, 1, 3)
    v = v.reshape(B, L, num_heads, head_dim).transpose(0, 2, 1, 3)
    attn = jnp.einsum("bhld,bhmd->bhlm", q, k) * scale
    attn = jax.nn.softmax(attn, axis=-1)
    o = jnp.einsum("bhlm,bhmd->bhld", attn, v)
    o = o.transpose(0, 2, 1, 3).reshape(B, L, D)
    x1 = x + o @ params["proj_w"]
    h2 = ln(x1, params["norm2_w"][0])
    hid = h2 @ params["mlp_w1"]
    hid = 0.5 * hid * (1.0 + jax.lax.erf(hid / jnp.sqrt(jnp.float32(2.0))))
    return x1 + hid @ params["mlp_w2"]


if __name__ == "__main__":
    # dim=128, head_dim=64 -> 2 heads, mlp_ratio=4 -> hidden=512, batch=2, seq=16, use_bias=False.
    B, L, D = 2, 16, 128
    head_dim = 64
    H = int(D * 4.0)

    key = jax.random.PRNGKey(0)
    kx, k1, k2, k3, k4 = jax.random.split(key, 5)

    x = jax.random.normal(kx, (B, L, D), dtype=jnp.float32)
    params = {
        "norm1_w": jnp.ones((1, D), jnp.float32),
        "norm2_w": jnp.ones((1, D), jnp.float32),
        "qkv_w": 0.02 * jax.random.normal(k1, (D, 3 * D), dtype=jnp.float32),
        "proj_w": 0.02 * jax.random.normal(k2, (D, D), dtype=jnp.float32),
        "mlp_w1": 0.02 * jax.random.normal(k3, (D, H), dtype=jnp.float32),
        "mlp_w2": 0.02 * jax.random.normal(k4, (H, D), dtype=jnp.float32),
    }

    out = block_forward(x, params, head_dim=head_dim)
    out = jax.block_until_ready(out)

    ref = block_reference(x, params, head_dim=head_dim)
    assert out.shape == (B, L, D)
    # bf16 MXU operands + approx reciprocal => compare to the f32 reference with a bf16-level tol.
    assert jnp.allclose(out, ref, atol=2e-2, rtol=2e-2), "mismatch vs reference"

    print("KERNEL_OK")
</pallas_src>

<mosaic_0001>
module attributes {stable_mosaic.version = 11 : i64} {
  func.func @block_kernel(%arg0: i32, %arg1: memref<1x16x128xf32, #tpu.memory_space<vmem>>, %arg2: memref<1x128xf32, #tpu.memory_space<vmem>>, %arg3: memref<1x128xf32, #tpu.memory_space<vmem>>, %arg4: memref<128x384xbf16, #tpu.memory_space<vmem>>, %arg5: memref<128x128xbf16, #tpu.memory_space<vmem>>, %arg6: memref<128x512xbf16, #tpu.memory_space<vmem>>, %arg7: memref<512x128xbf16, #tpu.memory_space<vmem>>, %arg8: memref<1x16x128xf32, #tpu.memory_space<vmem>>) attributes {dimension_semantics = [#tpu.dimension_semantics<parallel>], iteration_bounds = array<i64: 2>, scalar_prefetch = 0 : i64, scratch_operands = 0 : i64, tpu.core_type = #tpu.core_type<tc>, window_params = [{transform_indices = @transform_0, window_bounds = array<i64: 1, 16, 128>}, {pipeline_mode = #tpu.pipeline_mode<synchronous>, transform_indices = @transform_1, window_bounds = array<i64: 1, 128>}, {pipeline_mode = #tpu.pipeline_mode<synchronous>, transform_indices = @transform_2, window_bounds = array<i64: 1, 128>}, {pipeline_mode = #tpu.pipeline_mode<synchronous>, transform_indices = @transform_3, window_bounds = array<i64: 128, 384>}, {pipeline_mode = #tpu.pipeline_mode<synchronous>, transform_indices = @transform_4, window_bounds = array<i64: 128, 128>}, {pipeline_mode = #tpu.pipeline_mode<synchronous>, transform_indices = @transform_5, window_bounds = array<i64: 128, 512>}, {pipeline_mode = #tpu.pipeline_mode<synchronous>, transform_indices = @transform_6, window_bounds = array<i64: 512, 128>}, {transform_indices = @transform_7, window_bounds = array<i64: 1, 16, 128>}]} {
    %c0 = arith.constant 0 : index
    %c0_0 = arith.constant 0 : index
    %c0_1 = arith.constant 0 : index
    %0 = vector.load %arg1[%c0, %c0_0, %c0_1] : memref<1x16x128xf32, #tpu.memory_space<vmem>>, vector<1x16x128xf32>
    %1 = vector.shape_cast %0 : vector<1x16x128xf32> to vector<16x128xf32>
    %c0_2 = arith.constant 0 : index
    %c0_3 = arith.constant 0 : index
    %2 = vector.load %arg2[%c0_2, %c0_3] : memref<1x128xf32, #tpu.memory_space<vmem>>, vector<1x128xf32>
    %c0_4 = arith.constant 0 : index
    %c0_5 = arith.constant 0 : index
    %3 = vector.load %arg3[%c0_4, %c0_5] : memref<1x128xf32, #tpu.memory_space<vmem>>, vector<1x128xf32>
    %c0_6 = arith.constant 0 : index
    %c0_7 = arith.constant 0 : index
    %4 = vector.load %arg4[%c0_6, %c0_7] : memref<128x384xbf16, #tpu.memory_space<vmem>>, vector<128x384xbf16>
    %c0_8 = arith.constant 0 : index
    %c0_9 = arith.constant 0 : index
    %5 = vector.load %arg5[%c0_8, %c0_9] : memref<128x128xbf16, #tpu.memory_space<vmem>>, vector<128x128xbf16>
    %c0_10 = arith.constant 0 : index
    %c0_11 = arith.constant 0 : index
    %6 = vector.load %arg6[%c0_10, %c0_11] : memref<128x512xbf16, #tpu.memory_space<vmem>>, vector<128x512xbf16>
    %c0_12 = arith.constant 0 : index
    %c0_13 = arith.constant 0 : index
    %7 = vector.load %arg7[%c0_12, %c0_13] : memref<512x128xbf16, #tpu.memory_space<vmem>>, vector<512x128xbf16>
    %cst = arith.constant dense<0.000000e+00> : vector<16xf32>
    %8 = vector.multi_reduction <add>, %1, %cst [1] : vector<16x128xf32> to vector<16xf32>
    %9 = vector.shape_cast %8 : vector<16xf32> to vector<16x1xf32>
    %cst_14 = arith.constant 1.280000e+02 : f32
    %10 = vector.broadcast %cst_14 : f32 to vector<16x1xf32>
    %11 = arith.divf %9, %10 : vector<16x1xf32>
    %12 = vector.broadcast %11 : vector<16x1xf32> to vector<16x128xf32>
    %13 = arith.subf %1, %12 : vector<16x128xf32>
    %14 = arith.mulf %13, %13 : vector<16x128xf32>
    %cst_15 = arith.constant dense<0.000000e+00> : vector<16xf32>
    %15 = vector.multi_reduction <add>, %14, %cst_15 [1] : vector<16x128xf32> to vector<16xf32>
    %16 = vector.shape_cast %15 : vector<16xf32> to vector<16x1xf32>
    %cst_16 = arith.constant 1.280000e+02 : f32
    %17 = vector.broadcast %cst_16 : f32 to vector<16x1xf32>
    %18 = arith.divf %16, %17 : vector<16x1xf32>
    %19 = vector.broadcast %11 : vector<16x1xf32> to vector<16x128xf32>
    %20 = arith.subf %1, %19 : vector<16x128xf32>
    %cst_17 = arith.constant 9.99999997E-7 : f32
    %21 = vector.broadcast %cst_17 : f32 to vector<16x1xf32>
    %22 = arith.addf %18, %21 : vector<16x1xf32>
    %23 = math.rsqrt %22 : vector<16x1xf32>
    %24 = vector.broadcast %23 : vector<16x1xf32> to vector<16x128xf32>
    %25 = arith.mulf %20, %24 : vector<16x128xf32>
    %26 = vector.broadcast %2 : vector<1x128xf32> to vector<16x128xf32>
    %27 = arith.mulf %25, %26 : vector<16x128xf32>
    %28 = arith.truncf %27 : vector<16x128xf32> to vector<16x128xbf16>
    %cst_18 = arith.constant dense<0.000000e+00> : vector<16x384xf32>
    %29 = tpu.matmul %28, %4, %cst_18 {dimension_numbers = #tpu.dot_dimension_numbers<[1], [0], [0], [1], [0, 0, 1, 1], [], []>} : vector<16x128xbf16>, vector<128x384xbf16>, vector<16x384xf32> -> vector<16x384xf32>
    %30 = arith.truncf %29 : vector<16x384xf32> to vector<16x384xbf16>
    %31 = vector.shape_cast %30 : vector<16x384xbf16> to vector<1x16x384xbf16>
    %32 = vector.extract_strided_slice %31 {offsets = [0, 0, 0], sizes = [1, 16, 64], strides = [1, 1, 1]} : vector<1x16x384xbf16> to vector<1x16x64xbf16>
    %33 = vector.extract_strided_slice %31 {offsets = [0, 0, 128], sizes = [1, 16, 64], strides = [1, 1, 1]} : vector<1x16x384xbf16> to vector<1x16x64xbf16>
    %34 = vector.extract_strided_slice %31 {offsets = [0, 0, 256], sizes = [1, 16, 64], strides = [1, 1, 1]} : vector<1x16x384xbf16> to vector<1x16x64xbf16>
    "tpu.trace_start"() <{level = 10 : i32, message = "bqd,bkd->bqk"}> : () -> ()
    %cst_19 = arith.constant dense<0.000000e+00> : vector<1x16x16xf32>
    %35 = tpu.matmul %32, %33, %cst_19 {dimension_numbers = #tpu.dot_dimension_numbers<[2], [2], [1], [1], [0, 0, 0, 1, 1, 1], [0], [0]>} : vector<1x16x64xbf16>, vector<1x16x64xbf16>, vector<1x16x16xf32> -> vector<1x16x16xf32>
    "tpu.trace_stop"() : () -> ()
    %cst_20 = arith.constant dense<0xFF800000> : vector<1x16xf32>
    %36 = vector.multi_reduction <maximumf>, %35, %cst_20 [2] : vector<1x16x16xf32> to vector<1x16xf32>
    %37 = vector.shape_cast %36 : vector<1x16xf32> to vector<1x16x1xf32>
    %38 = vector.broadcast %37 : vector<1x16x1xf32> to vector<1x16x16xf32>
    %39 = arith.subf %35, %38 : vector<1x16x16xf32>
    %40 = math.exp %39 : vector<1x16x16xf32>
    %cst_21 = arith.constant dense<0.000000e+00> : vector<1x16xf32>
    %41 = vector.multi_reduction <add>, %40, %cst_21 [2] : vector<1x16x16xf32> to vector<1x16xf32>
    %42 = vector.shape_cast %41 : vector<1x16xf32> to vector<1x16x1xf32>
    %43 = tpu.reciprocal %42 {approx = true} : vector<1x16x1xf32> -> vector<1x16x1xf32>
    %44 = vector.broadcast %43 : vector<1x16x1xf32> to vector<1x16x16xf32>
    %45 = arith.mulf %40, %44 : vector<1x16x16xf32>
    %46 = arith.truncf %45 : vector<1x16x16xf32> to vector<1x16x16xbf16>
    "tpu.trace_start"() <{level = 10 : i32, message = "bqk,bkd->bqd"}> : () -> ()
    %cst_22 = arith.constant dense<0.000000e+00> : vector<1x16x64xf32>
    %47 = tpu.matmul %46, %34, %cst_22 {dimension_numbers = #tpu.dot_dimension_numbers<[2], [1], [1], [2], [0, 0, 0, 1, 1, 2], [0], [0]>} : vector<1x16x16xbf16>, vector<1x16x64xbf16>, vector<1x16x64xf32> -> vector<1x16x64xf32>
    "tpu.trace_stop"() : () -> ()
    %48 = arith.truncf %47 : vector<1x16x64xf32> to vector<1x16x64xbf16>
    %49 = vector.extract_strided_slice %31 {offsets = [0, 0, 64], sizes = [1, 16, 64], strides = [1, 1, 1]} : vector<1x16x384xbf16> to vector<1x16x64xbf16>
    %50 = vector.extract_strided_slice %31 {offsets = [0, 0, 192], sizes = [1, 16, 64], strides = [1, 1, 1]} : vector<1x16x384xbf16> to vector<1x16x64xbf16>
    %51 = vector.extract_strided_slice %31 {offsets = [0, 0, 320], sizes = [1, 16, 64], strides = [1, 1, 1]} : vector<1x16x384xbf16> to vector<1x16x64xbf16>
    "tpu.trace_start"() <{level = 10 : i32, message = "bqd,bkd->bqk"}> : () -> ()
    %cst_23 = arith.constant dense<0.000000e+00> : vector<1x16x16xf32>
    %52 = tpu.matmul %49, %50, %cst_23 {dimension_numbers = #tpu.dot_dimension_numbers<[2], [2], [1], [1], [0, 0, 0, 1, 1, 1], [0], [0]>} : vector<1x16x64xbf16>, vector<1x16x64xbf16>, vector<1x16x16xf32> -> vector<1x16x16xf32>
    "tpu.trace_stop"() : () -> ()
    %cst_24 = arith.constant dense<0xFF800000> : vector<1x16xf32>
    %53 = vector.multi_reduction <maximumf>, %52, %cst_24 [2] : vector<1x16x16xf32> to vector<1x16xf32>
    %54 = vector.shape_cast %53 : vector<1x16xf32> to vector<1x16x1xf32>
    %55 = vector.broadcast %54 : vector<1x16x1xf32> to vector<1x16x16xf32>
    %56 = arith.subf %52, %55 : vector<1x16x16xf32>
    %57 = math.exp %56 : vector<1x16x16xf32>
    %cst_25 = arith.constant dense<0.000000e+00> : vector<1x16xf32>
    %58 = vector.multi_reduction <add>, %57, %cst_25 [2] : vector<1x16x16xf32> to vector<1x16xf32>
    %59 = vector.shape_cast %58 : vector<1x16xf32> to vector<1x16x1xf32>
    %60 = tpu.reciprocal %59 {approx = true} : vector<1x16x1xf32> -> vector<1x16x1xf32>
    %61 = vector.broadcast %60 : vector<1x16x1xf32> to vector<1x16x16xf32>
    %62 = arith.mulf %57, %61 : vector<1x16x16xf32>
    %63 = arith.truncf %62 : vector<1x16x16xf32> to vector<1x16x16xbf16>
    "tpu.trace_start"() <{level = 10 : i32, message = "bqk,bkd->bqd"}> : () -> ()
    %cst_26 = arith.constant dense<0.000000e+00> : vector<1x16x64xf32>
    %64 = tpu.matmul %63, %51, %cst_26 {dimension_numbers = #tpu.dot_dimension_numbers<[2], [1], [1], [2], [0, 0, 0, 1, 1, 2], [0], [0]>} : vector<1x16x16xbf16>, vector<1x16x64xbf16>, vector<1x16x64xf32> -> vector<1x16x64xf32>
    "tpu.trace_stop"() : () -> ()
    %65 = arith.truncf %64 : vector<1x16x64xf32> to vector<1x16x64xbf16>
    %66 = tpu.concatenate %48, %65 in 2 : vector<1x16x64xbf16>, vector<1x16x64xbf16> -> vector<1x16x128xbf16>
    %67 = vector.shape_cast %66 : vector<1x16x128xbf16> to vector<16x128xbf16>
    %cst_27 = arith.constant dense<0.000000e+00> : vector<16x128xf32>
    %68 = tpu.matmul %67, %5, %cst_27 {dimension_numbers = #tpu.dot_dimension_numbers<[1], [0], [0], [1], [0, 0, 1, 1], [], []>} : vector<16x128xbf16>, vector<128x128xbf16>, vector<16x128xf32> -> vector<16x128xf32>
    %69 = arith.addf %1, %68 : vector<16x128xf32>
    %cst_28 = arith.constant dense<0.000000e+00> : vector<16xf32>
    %70 = vector.multi_reduction <add>, %69, %cst_28 [1] : vector<16x128xf32> to vector<16xf32>
    %71 = vector.shape_cast %70 : vector<16xf32> to vector<16x1xf32>
    %cst_29 = arith.constant 1.280000e+02 : f32
    %72 = vector.broadcast %cst_29 : f32 to vector<16x1xf32>
    %73 = arith.divf %71, %72 : vector<16x1xf32>
    %74 = vector.broadcast %73 : vector<16x1xf32> to vector<16x128xf32>
    %75 = arith.subf %69, %74 : vector<16x128xf32>
    %76 = arith.mulf %75, %75 : vector<16x128xf32>
    %cst_30 = arith.constant dense<0.000000e+00> : vector<16xf32>
    %77 = vector.multi_reduction <add>, %76, %cst_30 [1] : vector<16x128xf32> to vector<16xf32>
    %78 = vector.shape_cast %77 : vector<16xf32> to vector<16x1xf32>
    %cst_31 = arith.constant 1.280000e+02 : f32
    %79 = vector.broadcast %cst_31 : f32 to vector<16x1xf32>
    %80 = arith.divf %78, %79 : vector<16x1xf32>
    %81 = vector.broadcast %73 : vector<16x1xf32> to vector<16x128xf32>
    %82 = arith.subf %69, %81 : vector<16x128xf32>
    %cst_32 = arith.constant 9.99999997E-7 : f32
    %83 = vector.broadcast %cst_32 : f32 to vector<16x1xf32>
    %84 = arith.addf %80, %83 : vector<16x1xf32>
    %85 = math.rsqrt %84 : vector<16x1xf32>
    %86 = vector.broadcast %85 : vector<16x1xf32> to vector<16x128xf32>
    %87 = arith.mulf %82, %86 : vector<16x128xf32>
    %88 = vector.broadcast %3 : vector<1x128xf32> to vector<16x128xf32>
    %89 = arith.mulf %87, %88 : vector<16x128xf32>
    %90 = arith.truncf %89 : vector<16x128xf32> to vector<16x128xbf16>
    %cst_33 = arith.constant dense<0.000000e+00> : vector<16x512xf32>
    %91 = tpu.matmul %90, %6, %cst_33 {dimension_numbers = #tpu.dot_dimension_numbers<[1], [0], [0], [1], [0, 0, 1, 1], [], []>} : vector<16x128xbf16>, vector<128x512xbf16>, vector<16x512xf32> -> vector<16x512xf32>
    %cst_34 = arith.constant 5.000000e-01 : f32
    %92 = vector.broadcast %cst_34 : f32 to vector<16x512xf32>
    %93 = arith.mulf %92, %91 : vector<16x512xf32>
    %cst_35 = arith.constant 0.707106769 : f32
    %94 = vector.broadcast %cst_35 : f32 to vector<16x512xf32>
    %95 = arith.mulf %91, %94 : vector<16x512xf32>
    %96 = math.erf %95 : vector<16x512xf32>
    %cst_36 = arith.constant 1.000000e+00 : f32
    %97 = vector.broadcast %cst_36 : f32 to vector<16x512xf32>
    %98 = arith.addf %97, %96 : vector<16x512xf32>
    %99 = arith.mulf %93, %98 : vector<16x512xf32>
    %100 = arith.truncf %99 : vector<16x512xf32> to vector<16x512xbf16>
    %cst_37 = arith.constant dense<0.000000e+00> : vector<16x128xf32>
    %101 = tpu.matmul %100, %7, %cst_37 {dimension_numbers = #tpu.dot_dimension_numbers<[1], [0], [0], [1], [0, 0, 1, 1], [], []>} : vector<16x512xbf16>, vector<512x128xbf16>, vector<16x128xf32> -> vector<16x128xf32>
    %102 = arith.addf %69, %101 : vector<16x128xf32>
    %103 = vector.shape_cast %102 : vector<16x128xf32> to vector<1x16x128xf32>
    %c0_38 = arith.constant 0 : index
    %c0_39 = arith.constant 0 : index
    %c0_40 = arith.constant 0 : index
    %104 = vector.load %arg8[%c0_38, %c0_39, %c0_40] : memref<1x16x128xf32, #tpu.memory_space<vmem>>, vector<1x16x128xf32>
    tpu.vector_store %arg8[%c0_38, %c0_39, %c0_40], %103 {strides = array<i32>} : memref<1x16x128xf32, #tpu.memory_space<vmem>>, vector<1x16x128xf32>,
    return
  }
  func.func @transform_0(%arg0: i32) -> (i32, i32, i32) {
    %c0_i32 = arith.constant 0 : i32
    %c0_i32_0 = arith.constant 0 : i32
    %c0_i32_1 = arith.constant 0 : i32
    return %arg0, %c0_i32, %c0_i32_0 : i32, i32, i32
  }
  func.func @transform_1(%arg0: i32) -> (i32, i32) {
    %c0_i32 = arith.constant 0 : i32
    %c0_i32_0 = arith.constant 0 : i32
    %c0_i32_1 = arith.constant 0 : i32
    return %c0_i32, %c0_i32_0 : i32, i32
  }
  func.func @transform_2(%arg0: i32) -> (i32, i32) {
    %c0_i32 = arith.constant 0 : i32
    %c0_i32_0 = arith.constant 0 : i32
    %c0_i32_1 = arith.constant 0 : i32
    return %c0_i32, %c0_i32_0 : i32, i32
  }
  func.func @transform_3(%arg0: i32) -> (i32, i32) {
    %c0_i32 = arith.constant 0 : i32
    %c0_i32_0 = arith.constant 0 : i32
    %c0_i32_1 = arith.constant 0 : i32
    return %c0_i32, %c0_i32_0 : i32, i32
  }
  func.func @transform_4(%arg0: i32) -> (i32, i32) {
    %c0_i32 = arith.constant 0 : i32
    %c0_i32_0 = arith.constant 0 : i32
    %c0_i32_1 = arith.constant 0 : i32
    return %c0_i32, %c0_i32_0 : i32, i32
  }
  func.func @transform_5(%arg0: i32) -> (i32, i32) {
    %c0_i32 = arith.constant 0 : i32
    %c0_i32_0 = arith.constant 0 : i32
    %c0_i32_1 = arith.constant 0 : i32
    return %c0_i32, %c0_i32_0 : i32, i32
  }
  func.func @transform_6(%arg0: i32) -> (i32, i32) {
    %c0_i32 = arith.constant 0 : i32
    %c0_i32_0 = arith.constant 0 : i32
    %c0_i32_1 = arith.constant 0 : i32
    return %c0_i32, %c0_i32_0 : i32, i32
  }
  func.func @transform_7(%arg0: i32) -> (i32, i32, i32) {
    %c0_i32 = arith.constant 0 : i32
    %c0_i32_0 = arith.constant 0 : i32
    %c0_i32_1 = arith.constant 0 : i32
    return %arg0, %c0_i32, %c0_i32_0 : i32, i32, i32
  }
}

</mosaic_0001>

<llo_original>
// kernel: tpu_custom_call.1
$region0: #{tpu_custom_call.1}
  #allocation0 [shape = 'u32[]', space=smem, size = 0x4, offset = 0x4, fixed_abs, tag = 'smem constant byte address 0x4 - core index']
  #allocation1 [shape = 'u32[144,128]{1,0:T(1,128)}', space=vmem, size = 0x12000, scoped, tag = 'internal scratch']
  %s0 = inlined_call_operand.hbm [shape: f32[2,16,128], index: 0, kind: input, shape index: {}]
  %s1 = inlined_call_operand.vmem [shape: f32[1,128], index: 1, kind: input, shape index: {}]
  %s2 = inlined_call_operand.vmem [shape: f32[1,128], index: 2, kind: input, shape index: {}]
  %s3 = inlined_call_operand.hbm [shape: bf16[128,384], index: 3, kind: input, shape index: {}]
  %s4 = inlined_call_operand.hbm [shape: bf16[128,128], index: 4, kind: input, shape index: {}]
  %s5 = inlined_call_operand.hbm [shape: bf16[128,512], index: 5, kind: input, shape index: {}]
  %s6 = inlined_call_operand.hbm [shape: bf16[512,128], index: 6, kind: input, shape index: {}]
  %s7 = inlined_call_operand.hbm [shape: f32[2,16,128], index: 7, kind: output, shape index: {}]
  %s8 = sld [smem:[#allocation0]]
  $region81: #{tpu_custom_call.1} parent=0
    _
  %s10 = ssub.s32 1, %s8
  %s11 = scalar_select 0, %s10, %s8
  $region1: #{tpu_custom_call.1} parent=0
    #allocation2 [shape = 'u8[16384]{0}', space=vmem, size = 0x4000, scoped, tag = 'input window, operand 0']
    #allocation3 [shape = 's32[2]{0}', space=sflag, size = 0x8, scoped, tag = 'scoped memory for tpu_custom_call.1']
    #allocation4 [shape = 's32[2]{0}', space=sflag, size = 0x8, scoped, tag = 'scoped memory for tpu_custom_call.1']
    #allocation5 [shape = 'u8[98304]{0}', space=vmem, size = 0x18000, scoped, tag = 'input window, operand 3, single buffered']
    #allocation6 [shape = 's32[1]{0}', space=sflag, size = 0x4, scoped, tag = 'scoped memory for tpu_custom_call.1']
    #allocation7 [shape = 'u8[32768]{0}', space=vmem, size = 0x8000, scoped, tag = 'input window, operand 4, single buffered']
    #allocation8 [shape = 'u8[131072]{0}', space=vmem, size = 0x20000, scoped, tag = 'input window, operand 5, single buffered']
    #allocation9 [shape = 's32[1]{0}', space=sflag, size = 0x4, scoped, tag = 'scoped memory for tpu_custom_call.1']
    #allocation10 [shape = 'u8[131072]{0}', space=vmem, size = 0x20000, scoped, tag = 'input window, operand 6, single buffered']
    #allocation11 [shape = 'u8[16384]{0}', space=vmem, size = 0x4000, scoped, tag = 'output window, operand 0']
    %12 = vsyncpa [#allocation3], 0
    %s13 = scalar_lea.sflag [#allocation3], 1
    %14 = vsyncpa %s13, 0
    %15 = vsyncpa [#allocation6], 0
    %16 = vsyncpa [#allocation9], 0
    %17 = vsyncpa [#allocation4], 0
    %s18 = scalar_lea.sflag [#allocation4], 1
    %19 = vsyncpa %s18, 0
    loop: start=0, step=1, limit=4
    $region2: #{tpu_custom_call.1} parent=1 // loop_pre_header
      _
    $region3: #{tpu_custom_call.1} parent=1 // loop_header
      %s21 = sphi 0, %s25
      %p22 = scmp.ge.s32.totalorder %s21, 4
      %s31 = sphi 0, %s33
      %s34 = sphi 0, %s31
      %s35 = sphi 0, %s34
      %s51 = sphi 0, %s35
      %s55 = sphi 0, %s55
      %s57 = sphi 0, %s55
      %s58 = sphi 0, %s57
      %s72 = sphi 0, %s58
      %s76 = sphi 0, %s76
      %s78 = sphi 0, %s76
      %s79 = sphi 0, %s78
      %s93 = sphi 0, %s79
      %s97 = sphi 0, %s97
      %s99 = sphi 0, %s97
      %s100 = sphi 0, %s99
      %s114 = sphi 0, %s100
      %s118 = sphi 0, %s118
      %s120 = sphi 0, %s118
      %s121 = sphi 0, %s120
      %s135 = sphi 0, %s121
      %s139 = sphi 0, %s139
      %s141 = sphi 0, %s139
      %s142 = sphi 0, %s141
      %s156 = sphi 0, %s142
      %s160 = sphi 0, %s160
      %s162 = sphi 0, %s160
      %s163 = sphi 0, %s162
      %s177 = sphi 0, %s163
      %s183 = sphi 0, %s185
      %s186 = sphi 0, %s183
      %s187 = sphi 0, %s186
      %s203 = sphi 0, %s187
    $region4: #{tpu_custom_call.1} parent=1 // loop_header_branch
      %24 = sbr.rel (%p22) target = $region8
    $region5: #{tpu_custom_call.1} parent=1 // loop_body
      %s26 = ssub.s32 %s21, 1
      %s27 = ssub.s32 %s21, 2
      %s28 = sadd.s32 %s21, 1
      %s29 = ssub.s32 %s21, %s28
      %p30 = scmp.eq.s32.totalorder %s29, 0
      %s32 = sadd.s32 %s31, 1
      %s33 = scalar_select %p30, %s31, %s32
      %p36 = pneg %p30
      %p37 = scmp.eq.s32.totalorder %s21, 1
      %p38 = por %p36, %p37
      %p39 = scmp.ne.s32.totalorder %s31, %s34
      %p40 = scmp.eq.s32.totalorder %s21, 0
      %p41 = por %p39, %p40
      %p42 = scmp.ne.s32.totalorder %s31, %s34
      %p43 = scmp.eq.s32.totalorder %s26, 1
      %p44 = por %p42, %p43
      %p45 = scmp.ne.s32.totalorder %s34, %s35
      %p46 = scmp.eq.s32.totalorder %s26, 0
      %p47 = por %p45, %p46
      %p48 = scmp.ne.s32.totalorder %s34, %s35
      %p49 = scmp.eq.s32.totalorder %s27, 1
      %p50 = por %p48, %p49
      %p52 = scmp.ne.s32.totalorder %s35, %s51
      %p53 = scmp.eq.s32.totalorder %s27, 0
      %p54 = por %p52, %p53
      %s56 = sadd.s32 %s55, 1
      %p59 = scmp.eq.s32.totalorder %s21, 1
      %p60 = scmp.ne.s32.totalorder %s55, %s57
      %p61 = scmp.eq.s32.totalorder %s21, 0
      %p62 = por %p60, %p61
      %p63 = scmp.ne.s32.totalorder %s55, %s57
      %p64 = scmp.eq.s32.totalorder %s26, 1
      %p65 = por %p63, %p64
      %p66 = scmp.ne.s32.totalorder %s57, %s58
      %p67 = scmp.eq.s32.totalorder %s26, 0
      %p68 = por %p66, %p67
      %p69 = scmp.ne.s32.totalorder %s57, %s58
      %p70 = scmp.eq.s32.totalorder %s27, 1
      %p71 = por %p69, %p70
      %p73 = scmp.ne.s32.totalorder %s58, %s72
      %p74 = scmp.eq.s32.totalorder %s27, 0
      %p75 = por %p73, %p74
      %s77 = sadd.s32 %s76, 1
      %p80 = scmp.eq.s32.totalorder %s21, 1
      %p81 = scmp.ne.s32.totalorder %s76, %s78
      %p82 = scmp.eq.s32.totalorder %s21, 0
      %p83 = por %p81, %p82
      %p84 = scmp.ne.s32.totalorder %s76, %s78
      %p85 = scmp.eq.s32.totalorder %s26, 1
      %p86 = por %p84, %p85
      %p87 = scmp.ne.s32.totalorder %s78, %s79
      %p88 = scmp.eq.s32.totalorder %s26, 0
      %p89 = por %p87, %p88
      %p90 = scmp.ne.s32.totalorder %s78, %s79
      %p91 = scmp.eq.s32.totalorder %s27, 1
      %p92 = por %p90, %p91
      %p94 = scmp.ne.s32.totalorder %s79, %s93
      %p95 = scmp.eq.s32.totalorder %s27, 0
      %p96 = por %p94, %p95
      %s98 = sadd.s32 %s97, 1
      %p101 = scmp.eq.s32.totalorder %s21, 1
      %p102 = scmp.ne.s32.totalorder %s97, %s99
      %p103 = scmp.eq.s32.totalorder %s21, 0
      %p104 = por %p102, %p103
      %p105 = scmp.ne.s32.totalorder %s97, %s99
      %p106 = scmp.eq.s32.totalorder %s26, 1
      %p107 = por %p105, %p106
      %p108 = scmp.ne.s32.totalorder %s99, %s100
      %p109 = scmp.eq.s32.totalorder %s26, 0
      %p110 = por %p108, %p109
      %p111 = scmp.ne.s32.totalorder %s99, %s100
      %p112 = scmp.eq.s32.totalorder %s27, 1
      %p113 = por %p111, %p112
      %p115 = scmp.ne.s32.totalorder %s100, %s114
      %p116 = scmp.eq.s32.totalorder %s27, 0
      %p117 = por %p115, %p116
      %s119 = sadd.s32 %s118, 1
      %p122 = scmp.eq.s32.totalorder %s21, 1
      %p123 = scmp.ne.s32.totalorder %s118, %s120
      %p124 = scmp.eq.s32.totalorder %s21, 0
      %p125 = por %p123, %p124
      %p126 = scmp.ne.s32.totalorder %s118, %s120
      %p127 = scmp.eq.s32.totalorder %s26, 1
      %p128 = por %p126, %p127
      %p129 = scmp.ne.s32.totalorder %s120, %s121
      %p130 = scmp.eq.s32.totalorder %s26, 0
      %p131 = por %p129, %p130
      %p132 = scmp.ne.s32.totalorder %s120, %s121
      %p133 = scmp.eq.s32.totalorder %s27, 1
      %p134 = por %p132, %p133
      %p136 = scmp.ne.s32.totalorder %s121, %s135
      %p137 = scmp.eq.s32.totalorder %s27, 0
      %p138 = por %p136, %p137
      %s140 = sadd.s32 %s139, 1
      %p143 = scmp.eq.s32.totalorder %s21, 1
      %p144 = scmp.ne.s32.totalorder %s139, %s141
      %p145 = scmp.eq.s32.totalorder %s21, 0
      %p146 = por %p144, %p145
      %p147 = scmp.ne.s32.totalorder %s139, %s141
      %p148 = scmp.eq.s32.totalorder %s26, 1
      %p149 = por %p147, %p148
      %p150 = scmp.ne.s32.totalorder %s141, %s142
      %p151 = scmp.eq.s32.totalorder %s26, 0
      %p152 = por %p150, %p151
      %p153 = scmp.ne.s32.totalorder %s141, %s142
      %p154 = scmp.eq.s32.totalorder %s27, 1
      %p155 = por %p153, %p154
      %p157 = scmp.ne.s32.totalorder %s142, %s156
      %p158 = scmp.eq.s32.totalorder %s27, 0
      %p159 = por %p157, %p158
      %s161 = sadd.s32 %s160, 1
      %p164 = scmp.eq.s32.totalorder %s21, 1
      %p165 = scmp.ne.s32.totalorder %s160, %s162
      %p166 = scmp.eq.s32.totalorder %s21, 0
      %p167 = por %p165, %p166
      %p168 = scmp.ne.s32.totalorder %s160, %s162
      %p169 = scmp.eq.s32.totalorder %s26, 1
      %p170 = por %p168, %p169
      %p171 = scmp.ne.s32.totalorder %s162, %s163
      %p172 = scmp.eq.s32.totalorder %s26, 0
      %p173 = por %p171, %p172
      %p174 = scmp.ne.s32.totalorder %s162, %s163
      %p175 = scmp.eq.s32.totalorder %s27, 1
      %p176 = por %p174, %p175
      %p178 = scmp.ne.s32.totalorder %s163, %s177
      %p179 = scmp.eq.s32.totalorder %s27, 0
      %p180 = por %p178, %p179
      %s181 = ssub.s32 %s21, %s28
      %p182 = scmp.eq.s32.totalorder %s181, 0
      %s184 = sadd.s32 %s183, 1
      %s185 = scalar_select %p182, %s183, %s184
      %p188 = pneg %p182
      %p189 = scmp.eq.s32.totalorder %s21, 1
      %p190 = por %p188, %p189
      %p191 = scmp.ne.s32.totalorder %s183, %s186
      %p192 = scmp.eq.s32.totalorder %s21, 0
      %p193 = por %p191, %p192
      %p194 = scmp.ne.s32.totalorder %s183, %s186
      %p195 = scmp.eq.s32.totalorder %s26, 1
      %p196 = por %p194, %p195
      %p197 = scmp.ne.s32.totalorder %s186, %s187
      %p198 = scmp.eq.s32.totalorder %s26, 0
      %p199 = por %p197, %p198
      %p200 = scmp.ne.s32.totalorder %s186, %s187
      %p201 = scmp.eq.s32.totalorder %s27, 1
      %p202 = por %p200, %p201
      %p204 = scmp.ne.s32.totalorder %s187, %s203
      %p205 = scmp.eq.s32.totalorder %s27, 0
      %p206 = por %p204, %p205
      %p207 = scmp.le.s32.totalorder 1, %s21
      %p208 = scmp.lt.s32.totalorder %s21, 3
      %p209 = pnand %p207, %p208
      %p210 = pneg %p209
      // Predicated region
      $region9: #{tpu_custom_call.1} parent=5 // pred_check
        _
      $region10: #{tpu_custom_call.1} parent=5 // pred_check_branch
        %212 = sbr.rel (%p209) target = $region12
      $region11: #{tpu_custom_call.1} parent=5 // pred_region
        %s213 = ssub.s32 %s21, 1
        // Predicated region
        $region13: #{tpu_custom_call.1} parent=11 // pred_check
          %p214 = pneg %p68
        $region14: #{tpu_custom_call.1} parent=11 // pred_check_branch
          %216 = sbr.rel (%p214) target = $region16
        $region15: #{tpu_custom_call.1} parent=11 // pred_region
          _
        $region16: #{tpu_custom_call.1} parent=11 // pred_fallthru
          _
        // Predicated region
        $region17: #{tpu_custom_call.1} parent=11 // pred_check
          %p217 = pneg %p89
        $region18: #{tpu_custom_call.1} parent=11 // pred_check_branch
          %219 = sbr.rel (%p217) target = $region20
        $region19: #{tpu_custom_call.1} parent=11 // pred_region
          _
        $region20: #{tpu_custom_call.1} parent=11 // pred_fallthru
          _
        // Predicated region
        $region21: #{tpu_custom_call.1} parent=11 // pred_check
          %p220 = pneg %p110
        $region22: #{tpu_custom_call.1} parent=11 // pred_check_branch
          %222 = sbr.rel (%p220) target = $region24
        $region23: #{tpu_custom_call.1} parent=11 // pred_region
          %s224 = ssub.s32 3072, 3072
          %225 = vsyncadd [#allocation6], %s224
          %s226 = sshll.u32 [#allocation5], 4
          %s227 = int_to_ptr.vmem [resolvable:$true] %s226
          %232 = dma.hbm_to_vmem [thread:$0]  %s3, 3072, %s227, [#allocation6], 192, 192, 12
        $region24: #{tpu_custom_call.1} parent=11 // pred_fallthru
          _
        // Predicated region
        $region25: #{tpu_custom_call.1} parent=11 // pred_check
          %p233 = pneg %p131
        $region26: #{tpu_custom_call.1} parent=11 // pred_check_branch
          %235 = sbr.rel (%p233) target = $region28
        $region27: #{tpu_custom_call.1} parent=11 // pred_region
          %s237 = ssub.s32 1024, 1024
          %238 = vsyncadd [#allocation6], %s237
          %s239 = sshll.u32 [#allocation7], 4
          %s240 = int_to_ptr.vmem [resolvable:$true] %s239
          %245 = dma.hbm_to_vmem [thread:$0]  %s4, 1024, %s240, [#allocation6], 64, 64, 4
        $region28: #{tpu_custom_call.1} parent=11 // pred_fallthru
          _
        // Predicated region
        $region29: #{tpu_custom_call.1} parent=11 // pred_check
          %p246 = pneg %p152
        $region30: #{tpu_custom_call.1} parent=11 // pred_check_branch
          %248 = sbr.rel (%p246) target = $region32
        $region31: #{tpu_custom_call.1} parent=11 // pred_region
          %s250 = ssub.s32 4096, 4096
          %251 = vsyncadd [#allocation9], %s250
          %s252 = sshll.u32 [#allocation8], 4
          %s253 = int_to_ptr.vmem [resolvable:$true] %s252
          %258 = dma.hbm_to_vmem [thread:$0]  %s5, 4096, %s253, [#allocation9], 256, 256, 16
        $region32: #{tpu_custom_call.1} parent=11 // pred_fallthru
          _
        // Predicated region
        $region33: #{tpu_custom_call.1} parent=11 // pred_check
          %p259 = pneg %p173
        $region34: #{tpu_custom_call.1} parent=11 // pred_check_branch
          %261 = sbr.rel (%p259) target = $region36
        $region35: #{tpu_custom_call.1} parent=11 // pred_region
          %s263 = ssub.s32 4096, 4096
          %264 = vsyncadd [#allocation9], %s263
          %s265 = sshll.u32 [#allocation10], 4
          %s266 = int_to_ptr.vmem [resolvable:$true] %s265
          %271 = dma.hbm_to_vmem [thread:$0]  %s6, 4096, %s266, [#allocation9], 64, 64, 4
        $region36: #{tpu_custom_call.1} parent=11 // pred_fallthru
          _
      $region12: #{tpu_custom_call.1} parent=5 // pred_fallthru
        _
      %p272 = scmp.lt.s32.totalorder %s21, 2
      // Predicated region
      $region37: #{tpu_custom_call.1} parent=5 // pred_check
        %p273 = pneg %p272
      $region38: #{tpu_custom_call.1} parent=5 // pred_check_branch
        %275 = sbr.rel (%p273) target = $region40
      $region39: #{tpu_custom_call.1} parent=5 // pred_region
        // Predicated region
        $region41: #{tpu_custom_call.1} parent=39 // pred_check
          %p276 = pneg %p41
        $region42: #{tpu_custom_call.1} parent=39 // pred_check_branch
          %278 = sbr.rel (%p276) target = $region44
        $region43: #{tpu_custom_call.1} parent=39 // pred_region
          %s279 = sand.u32 %s31, 1
          %s280 = scalar_lea.sflag [#allocation3], %s279
          %s281 = sand.u32 %s31, 1
          %s282 = smul.addr %s281, 16
          %s283 = scalar_lea.vmem [#allocation2], %s282
          %s285 = ssub.s32 256, 256
          %286 = vsyncadd %s280, %s285
          %s287 = smul.addr %s21, 2
          %s288 = smul.addr %s287, 128
          %s289 = scalar_lea.hbm %s0, %s288
          %s290 = sshll.u32 %s283, 4
          %s291 = int_to_ptr.vmem [resolvable:$true] %s290
          %296 = dma.hbm_to_vmem [thread:$0]  %s289, 256, %s291, %s280, 128, 128, 8
        $region44: #{tpu_custom_call.1} parent=39 // pred_fallthru
          _
      $region40: #{tpu_custom_call.1} parent=5 // pred_fallthru
        _
      %p297 = scmp.le.s32.totalorder 1, %s21
      %p298 = scmp.lt.s32.totalorder %s21, 3
      %p299 = pnand %p297, %p298
      %p300 = pneg %p299
      // Predicated region
      $region45: #{tpu_custom_call.1} parent=5 // pred_check
        _
      $region46: #{tpu_custom_call.1} parent=5 // pred_check_branch
        %302 = sbr.rel (%p299) target = $region48
      $region47: #{tpu_custom_call.1} parent=5 // pred_region
        %s303 = ssub.s32 %s21, 1
        %s304 = sand.u32 %s34, 1
        %s305 = scalar_lea.sflag [#allocation3], %s304
        %s306 = sand.u32 %s34, 1
        %s307 = smul.addr %s306, 16
        %s308 = scalar_lea.vmem [#allocation2], %s307
        // Predicated region
        $region49: #{tpu_custom_call.1} parent=47 // pred_check
          %p309 = pneg %p47
        $region50: #{tpu_custom_call.1} parent=47 // pred_check_branch
          %311 = sbr.rel (%p309) target = $region52
        $region51: #{tpu_custom_call.1} parent=47 // pred_region
          %312 = dma.done %s305, 256
        $region52: #{tpu_custom_call.1} parent=47 // pred_fallthru
          _
        // Predicated region
        $region53: #{tpu_custom_call.1} parent=47 // pred_check
          %p313 = pneg %p110
        $region54: #{tpu_custom_call.1} parent=47 // pred_check_branch
          %315 = sbr.rel (%p313) target = $region56
        $region55: #{tpu_custom_call.1} parent=47 // pred_region
          %316 = dma.done [#allocation6], 3072
        $region56: #{tpu_custom_call.1} parent=47 // pred_fallthru
          _
        // Predicated region
        $region57: #{tpu_custom_call.1} parent=47 // pred_check
          %p317 = pneg %p131
        $region58: #{tpu_custom_call.1} parent=47 // pred_check_branch
          %319 = sbr.rel (%p317) target = $region60
        $region59: #{tpu_custom_call.1} parent=47 // pred_region
          %320 = dma.done [#allocation6], 1024
        $region60: #{tpu_custom_call.1} parent=47 // pred_fallthru
          _
        // Predicated region
        $region61: #{tpu_custom_call.1} parent=47 // pred_check
          %p321 = pneg %p152
        $region62: #{tpu_custom_call.1} parent=47 // pred_check_branch
          %323 = sbr.rel (%p321) target = $region64
        $region63: #{tpu_custom_call.1} parent=47 // pred_region
          %324 = dma.done [#allocation9], 4096
        $region64: #{tpu_custom_call.1} parent=47 // pred_fallthru
          _
        // Predicated region
        $region65: #{tpu_custom_call.1} parent=47 // pred_check
          %p325 = pneg %p173
        $region66: #{tpu_custom_call.1} parent=47 // pred_check_branch
          %327 = sbr.rel (%p325) target = $region68
        $region67: #{tpu_custom_call.1} parent=47 // pred_region
          %328 = dma.done [#allocation9], 4096
        $region68: #{tpu_custom_call.1} parent=47 // pred_fallthru
          _
        %s329 = sand.u32 %s34, 1
        %s330 = scalar_lea.sflag [#allocation3], %s329
        %s331 = sand.u32 %s34, 1
        %s332 = smul.addr %s331, 16
        %s333 = scalar_lea.vmem [#allocation2], %s332
        %p334 = pneg %p47
        %p335 = pneg %p44
        %p336 = pneg %p68
        %p337 = pneg %p65
        %p338 = pneg %p89
        %p339 = pneg %p86
        %p340 = pneg %p110
        %p341 = pneg %p107
        %p342 = pneg %p131
        %p343 = pneg %p128
        %p344 = pneg %p152
        %p345 = pneg %p149
        %p346 = pneg %p173
        %p347 = pneg %p170
        %p348 = pneg %p199
        %p349 = pneg %p196
        %s350 = sand.u32 %s186, 1
        %s351 = scalar_lea.sflag [#allocation4], %s350
        %s352 = sand.u32 %s186, 1
        %s353 = smul.addr %s352, 16
        %s354 = scalar_lea.vmem [#allocation11], %s353
        %v356 = vld [vmem:[%s308] sm:$0xff]
        %v357 = vld [vmem:[%s308 + $0x8] sm:$0xff]
        %v358 = vld [vmem:[%s1] sm:$0x1]
        %v359 = vld [vmem:[%s2] sm:$0x1]
        %v360 = vld [vmem:[#allocation5] sm:$0xff]
        %v361 = vld [vmem:[#allocation5 + $0x8] sm:$0xf]
        %v362 = vld [vmem:[#allocation5 + $0xc] sm:$0xff]
        %v363 = vld [vmem:[#allocation5 + $0x14] sm:$0xf]
        %v364 = vld [vmem:[#allocation5 + $0x18] sm:$0xff]
        %v365 = vld [vmem:[#allocation5 + $0x20] sm:$0xf]
        %v366 = vld [vmem:[#allocation5 + $0x24] sm:$0xff]
        %v367 = vld [vmem:[#allocation5 + $0x2c] sm:$0xf]
        %v368 = vld [vmem:[#allocation5 + $0x30] sm:$0xff]
        %v369 = vld [vmem:[#allocation5 + $0x38] sm:$0xf]
        %v370 = vld [vmem:[#allocation5 + $0x3c] sm:$0xff]
        %v371 = vld [vmem:[#allocation5 + $0x44] sm:$0xf]
        %v372 = vld [vmem:[#allocation5 + $0x48] sm:$0xff]
        %v373 = vld [vmem:[#allocation5 + $0x50] sm:$0xf]
        %v374 = vld [vmem:[#allocation5 + $0x54] sm:$0xff]
        %v375 = vld [vmem:[#allocation5 + $0x5c] sm:$0xf]
        %v376 = vld [vmem:[#allocation5 + $0x60] sm:$0xff]
        %v377 = vld [vmem:[#allocation5 + $0x68] sm:$0xf]
        %v378 = vld [vmem:[#allocation5 + $0x6c] sm:$0xff]
        %v379 = vld [vmem:[#allocation5 + $0x74] sm:$0xf]
        %v380 = vld [vmem:[#allocation5 + $0x78] sm:$0xff]
        %v381 = vld [vmem:[#allocation5 + $0x80] sm:$0xf]
        %v382 = vld [vmem:[#allocation5 + $0x84] sm:$0xff]
        %v383 = vld [vmem:[#allocation5 + $0x8c] sm:$0xf]
        %v384 = vld [vmem:[#allocation5 + $0x90] sm:$0xff]
        %v385 = vld [vmem:[#allocation5 + $0x98] sm:$0xf]
        %v386 = vld [vmem:[#allocation5 + $0x9c] sm:$0xff]
        %v387 = vld [vmem:[#allocation5 + $0xa4] sm:$0xf]
        %v388 = vld [vmem:[#allocation5 + $0xa8] sm:$0xff]
        %v389 = vld [vmem:[#allocation5 + $0xb0] sm:$0xf]
        %v390 = vld [vmem:[#allocation5 + $0xb4] sm:$0xff]
        %v391 = vld [vmem:[#allocation5 + $0xbc] sm:$0xf]
        %v392 = vld [vmem:[#allocation7] sm:$0xf]
        %v393 = vld [vmem:[#allocation7 + $0x4] sm:$0xf]
        %v394 = vld [vmem:[#allocation7 + $0x8] sm:$0xf]
        %v395 = vld [vmem:[#allocation7 + $0xc] sm:$0xf]
        %v396 = vld [vmem:[#allocation7 + $0x10] sm:$0xf]
        %v397 = vld [vmem:[#allocation7 + $0x14] sm:$0xf]
        %v398 = vld [vmem:[#allocation7 + $0x18] sm:$0xf]
        %v399 = vld [vmem:[#allocation7 + $0x1c] sm:$0xf]
        %v400 = vld [vmem:[#allocation7 + $0x20] sm:$0xf]
        %v401 = vld [vmem:[#allocation7 + $0x24] sm:$0xf]
        %v402 = vld [vmem:[#allocation7 + $0x28] sm:$0xf]
        %v403 = vld [vmem:[#allocation7 + $0x2c] sm:$0xf]
        %v404 = vld [vmem:[#allocation7 + $0x30] sm:$0xf]
        %v405 = vld [vmem:[#allocation7 + $0x34] sm:$0xf]
        %v406 = vld [vmem:[#allocation7 + $0x38] sm:$0xf]
        %v407 = vld [vmem:[#allocation7 + $0x3c] sm:$0xf]
        %v408 = vld [vmem:[#allocation8] sm:$0xff]
        %v409 = vld [vmem:[#allocation8 + $0x8] sm:$0xff]
        %v410 = vld [vmem:[#allocation8 + $0x10] sm:$0xff]
        %v411 = vld [vmem:[#allocation8 + $0x18] sm:$0xff]
        %v412 = vld [vmem:[#allocation8 + $0x20] sm:$0xff]
        %v413 = vld [vmem:[#allocation8 + $0x28] sm:$0xff]
        %v414 = vld [vmem:[#allocation8 + $0x30] sm:$0xff]
        %v415 = vld [vmem:[#allocation8 + $0x38] sm:$0xff]
        %v416 = vld [vmem:[#allocation8 + $0x40] sm:$0xff]
        %v417 = vld [vmem:[#allocation8 + $0x48] sm:$0xff]
        %v418 = vld [vmem:[#allocation8 + $0x50] sm:$0xff]
        %v419 = vld [vmem:[#allocation8 + $0x58] sm:$0xff]
        %v420 = vld [vmem:[#allocation8 + $0x60] sm:$0xff]
        %v421 = vld [vmem:[#allocation8 + $0x68] sm:$0xff]
        %v422 = vld [vmem:[#allocation8 + $0x70] sm:$0xff]
        %v423 = vld [vmem:[#allocation8 + $0x78] sm:$0xff]
        %v424 = vld [vmem:[#allocation8 + $0x80] sm:$0xff]
        %v425 = vld [vmem:[#allocation8 + $0x88] sm:$0xff]
        %v426 = vld [vmem:[#allocation8 + $0x90] sm:$0xff]
        %v427 = vld [vmem:[#allocation8 + $0x98] sm:$0xff]
        %v428 = vld [vmem:[#allocation8 + $0xa0] sm:$0xff]
        %v429 = vld [vmem:[#allocation8 + $0xa8] sm:$0xff]
        %v430 = vld [vmem:[#allocation8 + $0xb0] sm:$0xff]
        %v431 = vld [vmem:[#allocation8 + $0xb8] sm:$0xff]
        %v432 = vld [vmem:[#allocation8 + $0xc0] sm:$0xff]
        %v433 = vld [vmem:[#allocation8 + $0xc8] sm:$0xff]
        %v434 = vld [vmem:[#allocation8 + $0xd0] sm:$0xff]
        %v435 = vld [vmem:[#allocation8 + $0xd8] sm:$0xff]
        %v436 = vld [vmem:[#allocation8 + $0xe0] sm:$0xff]
        %v437 = vld [vmem:[#allocation8 + $0xe8] sm:$0xff]
        %v438 = vld [vmem:[#allocation8 + $0xf0] sm:$0xff]
        %v439 = vld [vmem:[#allocation8 + $0xf8] sm:$0xff]
        %v440 = vld [vmem:[#allocation10] sm:$0xf]
        %v441 = vld [vmem:[#allocation10 + $0x4] sm:$0xf]
        %v442 = vld [vmem:[#allocation10 + $0x8] sm:$0xf]
        %v443 = vld [vmem:[#allocation10 + $0xc] sm:$0xf]
        %v444 = vld [vmem:[#allocation10 + $0x10] sm:$0xf]
        %v445 = vld [vmem:[#allocation10 + $0x14] sm:$0xf]
        %v446 = vld [vmem:[#allocation10 + $0x18] sm:$0xf]
        %v447 = vld [vmem:[#allocation10 + $0x1c] sm:$0xf]
        %v448 = vld [vmem:[#allocation10 + $0x20] sm:$0xf]
        %v449 = vld [vmem:[#allocation10 + $0x24] sm:$0xf]
        %v450 = vld [vmem:[#allocation10 + $0x28] sm:$0xf]
        %v451 = vld [vmem:[#allocation10 + $0x2c] sm:$0xf]
        %v452 = vld [vmem:[#allocation10 + $0x30] sm:$0xf]
        %v453 = vld [vmem:[#allocation10 + $0x34] sm:$0xf]
        %v454 = vld [vmem:[#allocation10 + $0x38] sm:$0xf]
        %v455 = vld [vmem:[#allocation10 + $0x3c] sm:$0xf]
        %v456 = vld [vmem:[#allocation10 + $0x40] sm:$0xf]
        %v457 = vld [vmem:[#allocation10 + $0x44] sm:$0xf]
        %v458 = vld [vmem:[#allocation10 + $0x48] sm:$0xf]
        %v459 = vld [vmem:[#allocation10 + $0x4c] sm:$0xf]
        %v460 = vld [vmem:[#allocation10 + $0x50] sm:$0xf]
        %v461 = vld [vmem:[#allocation10 + $0x54] sm:$0xf]
        %v462 = vld [vmem:[#allocation10 + $0x58] sm:$0xf]
        %v463 = vld [vmem:[#allocation10 + $0x5c] sm:$0xf]
        %v464 = vld [vmem:[#allocation10 + $0x60] sm:$0xf]
        %v465 = vld [vmem:[#allocation10 + $0x64] sm:$0xf]
        %v466 = vld [vmem:[#allocation10 + $0x68] sm:$0xf]
        %v467 = vld [vmem:[#allocation10 + $0x6c] sm:$0xf]
        %v468 = vld [vmem:[#allocation10 + $0x70] sm:$0xf]
        %v469 = vld [vmem:[#allocation10 + $0x74] sm:$0xf]
        %v470 = vld [vmem:[#allocation10 + $0x78] sm:$0xf]
        %v471 = vld [vmem:[#allocation10 + $0x7c] sm:$0xf]
        %v472 = vld [vmem:[#allocation10 + $0x80] sm:$0xf]
        %v473 = vld [vmem:[#allocation10 + $0x84] sm:$0xf]
        %v474 = vld [vmem:[#allocation10 + $0x88] sm:$0xf]
        %v475 = vld [vmem:[#allocation10 + $0x8c] sm:$0xf]
        %v476 = vld [vmem:[#allocation10 + $0x90] sm:$0xf]
        %v477 = vld [vmem:[#allocation10 + $0x94] sm:$0xf]
        %v478 = vld [vmem:[#allocation10 + $0x98] sm:$0xf]
        %v479 = vld [vmem:[#allocation10 + $0x9c] sm:$0xf]
        %v480 = vld [vmem:[#allocation10 + $0xa0] sm:$0xf]
        %v481 = vld [vmem:[#allocation10 + $0xa4] sm:$0xf]
        %v482 = vld [vmem:[#allocation10 + $0xa8] sm:$0xf]
        %v483 = vld [vmem:[#allocation10 + $0xac] sm:$0xf]
        %v484 = vld [vmem:[#allocation10 + $0xb0] sm:$0xf]
        %v485 = vld [vmem:[#allocation10 + $0xb4] sm:$0xf]
        %v486 = vld [vmem:[#allocation10 + $0xb8] sm:$0xf]
        %v487 = vld [vmem:[#allocation10 + $0xbc] sm:$0xf]
        %v488 = vld [vmem:[#allocation10 + $0xc0] sm:$0xf]
        %v489 = vld [vmem:[#allocation10 + $0xc4] sm:$0xf]
        %v490 = vld [vmem:[#allocation10 + $0xc8] sm:$0xf]
        %v491 = vld [vmem:[#allocation10 + $0xcc] sm:$0xf]
        %v492 = vld [vmem:[#allocation10 + $0xd0] sm:$0xf]
        %v493 = vld [vmem:[#allocation10 + $0xd4] sm:$0xf]
        %v494 = vld [vmem:[#allocation10 + $0xd8] sm:$0xf]
        %v495 = vld [vmem:[#allocation10 + $0xdc] sm:$0xf]
        %v496 = vld [vmem:[#allocation10 + $0xe0] sm:$0xf]
        %v497 = vld [vmem:[#allocation10 + $0xe4] sm:$0xf]
        %v498 = vld [vmem:[#allocation10 + $0xe8] sm:$0xf]
        %v499 = vld [vmem:[#allocation10 + $0xec] sm:$0xf]
        %v500 = vld [vmem:[#allocation10 + $0xf0] sm:$0xf]
        %v501 = vld [vmem:[#allocation10 + $0xf4] sm:$0xf]
        %v502 = vld [vmem:[#allocation10 + $0xf8] sm:$0xf]
        %v503 = vld [vmem:[#allocation10 + $0xfc] sm:$0xf]
        %504 = vadd.xlane.f32.xlu0 %v356
        %v505 = vpop.xlane.xlu0 %504
        %506 = vadd.xlane.f32.xlu0 %v357
        %v507 = vpop.xlane.xlu0 %506
        %v508 = vrcp.pop 128.0
        %v509 = vmul.f32 %v505, %v508
        %v510 = vmul.f32 %v507, %v508
        %v511 = vsub.f32 %v356, %v509
        %v512 = vsub.f32 %v357, %v510
        %v513 = vmul.f32 %v511, %v511
        %v514 = vmul.f32 %v512, %v512
        %515 = vadd.xlane.f32.xlu0 %v513
        %v516 = vpop.xlane.xlu0 %515
        %517 = vadd.xlane.f32.xlu0 %v514
        %v518 = vpop.xlane.xlu0 %517
        %v519 = vmul.f32 %v516, %v508
        %v520 = vmul.f32 %v518, %v508
        %v521 = vadd.f32 %v519, 1e-06
        %v522 = vadd.f32 %v520, 1e-06
        %v523 = vrsqrt.pop %v521
        %v524 = vrsqrt.pop %v522
        %v525 = vmul.f32 %v511, %v523
        %v526 = vmul.f32 %v512, %v524
        %v528 = vlaneseq
        %v529 = vshrl.u32 %v528, 7
        %v530 = vsub.s32 0, %v529
        %v531 = vrot.slane %v358, %v530
        %v533 = vmul.f32 %v525, %v531
        %v534 = vmul.f32 %v526, %v531
        %v535 = vpack.c.bf16 %v534, %v533
        %v568 = vunpack.c.l.b16 %v360
        %v569 = vunpack.c.h.b16 %v360
        %v570 = vunpack.c.l.b16 %v361
        %v571 = vunpack.c.l.b16 %v362
        %v572 = vunpack.c.h.b16 %v362
        %v573 = vunpack.c.l.b16 %v363
        %v574 = vunpack.c.l.b16 %v364
        %v575 = vunpack.c.h.b16 %v364
        %v576 = vunpack.c.l.b16 %v365
        %v577 = vunpack.c.l.b16 %v366
        %v578 = vunpack.c.h.b16 %v366
        %v579 = vunpack.c.l.b16 %v367
        %v580 = vunpack.c.l.b16 %v368
        %v581 = vunpack.c.h.b16 %v368
        %v582 = vunpack.c.l.b16 %v369
        %v583 = vunpack.c.l.b16 %v370
        %v584 = vunpack.c.h.b16 %v370
        %v585 = vunpack.c.l.b16 %v371
        %v586 = vunpack.c.l.b16 %v372
        %v587 = vunpack.c.h.b16 %v372
        %v588 = vunpack.c.l.b16 %v373
        %v589 = vunpack.c.l.b16 %v374
        %v590 = vunpack.c.h.b16 %v374
        %v591 = vunpack.c.l.b16 %v375
        %v592 = vunpack.c.l.b16 %v376
        %v593 = vunpack.c.h.b16 %v376
        %v594 = vunpack.c.l.b16 %v377
        %v595 = vunpack.c.l.b16 %v378
        %v596 = vunpack.c.h.b16 %v378
        %v597 = vunpack.c.l.b16 %v379
        %v598 = vunpack.c.l.b16 %v380
        %v599 = vunpack.c.h.b16 %v380
        %v600 = vunpack.c.l.b16 %v381
        %v601 = vunpack.c.l.b16 %v382
        %v602 = vunpack.c.h.b16 %v382
        %v603 = vunpack.c.l.b16 %v383
        %v604 = vunpack.c.l.b16 %v384
        %v605 = vunpack.c.h.b16 %v384
        %v606 = vunpack.c.l.b16 %v385
        %v607 = vunpack.c.l.b16 %v386
        %v608 = vunpack.c.h.b16 %v386
        %v609 = vunpack.c.l.b16 %v387
        %v610 = vunpack.c.l.b16 %v388
        %v611 = vunpack.c.h.b16 %v388
        %v612 = vunpack.c.l.b16 %v389
        %v613 = vunpack.c.l.b16 %v390
        %v614 = vunpack.c.h.b16 %v390
        %v615 = vunpack.c.l.b16 %v391
        %v616 = vpack.c.b16 %v571, %v568
        %v617 = vpack.c.b16 %v572, %v569
        %v618 = vpack.c.b16 %v573, %v570
        %v619 = vpack.c.b16 %v577, %v574
        %v620 = vpack.c.b16 %v578, %v575
        %v621 = vpack.c.b16 %v579, %v576
        %v622 = vpack.c.b16 %v583, %v580
        %v623 = vpack.c.b16 %v584, %v581
        %v624 = vpack.c.b16 %v585, %v582
        %v625 = vpack.c.b16 %v589, %v586
        %v626 = vpack.c.b16 %v590, %v587
        %v627 = vpack.c.b16 %v591, %v588
        %v628 = vpack.c.b16 %v595, %v592
        %v629 = vpack.c.b16 %v596, %v593
        %v630 = vpack.c.b16 %v597, %v594
        %v631 = vpack.c.b16 %v601, %v598
        %v632 = vpack.c.b16 %v602, %v599
        %v633 = vpack.c.b16 %v603, %v600
        %v634 = vpack.c.b16 %v607, %v604
        %v635 = vpack.c.b16 %v608, %v605
        %v636 = vpack.c.b16 %v609, %v606
        %v637 = vpack.c.b16 %v613, %v610
        %v638 = vpack.c.b16 %v614, %v611
        %v639 = vpack.c.b16 %v615, %v612
        %664 = vmatprep.subr.bf16.mxu0 %v617
        %665 = vmatpush1.bf16.msra.mxu0 %v616
        %666 = vmatprep.subr.bf16.mxu0 %v620
        %667 = vmatpush1.bf16.msra.mxu0 %v619
        %668 = vmatprep.subr.bf16.mxu0 %v623
        %669 = vmatpush1.bf16.msra.mxu0 %v622
        %670 = vmatprep.subr.bf16.mxu0 %v626
        %671 = vmatpush1.bf16.msra.mxu0 %v625
        %672 = vmatprep.subr.bf16.mxu0 %v629
        %673 = vmatpush1.bf16.msra.mxu0 %v628
        %674 = vmatprep.subr.bf16.mxu0 %v632
        %675 = vmatpush1.bf16.msra.mxu0 %v631
        %676 = vmatprep.subr.bf16.mxu0 %v635
        %677 = vmatpush1.bf16.msra.mxu0 %v634
        %678 = vmatprep.subr.bf16.mxu0 %v638
        %679 = vmatpush1.bf16.msra.mxu0 %v637
        %680 = vmatprep.subr.bf16.mxu0 0
        %681 = vmatpush1.bf16.msra.mxu0 0
        %682 = vmatprep.subr.bf16.mxu0 0
        %683 = vmatpush1.bf16.msra.mxu0 0
        %684 = vmatprep.subr.bf16.mxu0 0
        %685 = vmatpush1.bf16.msra.mxu0 0
        %686 = vmatprep.subr.bf16.mxu0 0
        %687 = vmatpush1.bf16.msra.mxu0 0
        %688 = vmatprep.subr.bf16.mxu0 0
        %689 = vmatpush1.bf16.msra.mxu0 0
        %690 = vmatprep.subr.bf16.mxu0 0
        %691 = vmatpush1.bf16.msra.mxu0 0
        %692 = vmatprep.subr.bf16.mxu0 0
        %693 = vmatpush1.bf16.msra.mxu0 0
        %694 = vmatprep.subr.bf16.mxu0 0
        %695 = vmatpush1.bf16.msra.mxu0 0
        %696 = vmatprep.mubr.bf16.mxu0 0
        %697 = vmatmul.mubr.bf16.gmra.mrb[0].mxu0 %v535
        %v698 = vpop.f32.mrb[0].mxu0
        %v699 = vadd.f32 0.0, %v698
        %v700 = vpop.f32.mrb[0].mxu0
        %v701 = vadd.f32 0.0, %v700
        %v702 = vpop.f32.mrb[0].mxu0
        %v703 = vadd.f32 0.0, %v702
        %v704 = vpop.f32.mrb[0].mxu0
        %v705 = vadd.f32 0.0, %v704
        %706 = vdwg.mxu0
        %707 = vmatprep.subr.bf16.mxu0 0
        %708 = vmatpush1.bf16.msra.mxu0 %v618
        %709 = vmatprep.subr.bf16.mxu0 0
        %710 = vmatpush1.bf16.msra.mxu0 %v621
        %711 = vmatprep.subr.bf16.mxu0 0
        %712 = vmatpush1.bf16.msra.mxu0 %v624
        %713 = vmatprep.subr.bf16.mxu0 0
        %714 = vmatpush1.bf16.msra.mxu0 %v627
        %715 = vmatprep.subr.bf16.mxu0 0
        %716 = vmatpush1.bf16.msra.mxu0 %v630
        %717 = vmatprep.subr.bf16.mxu0 0
        %718 = vmatpush1.bf16.msra.mxu0 %v633
        %719 = vmatprep.subr.bf16.mxu0 0
        %720 = vmatpush1.bf16.msra.mxu0 %v636
        %721 = vmatprep.subr.bf16.mxu0 0
        %722 = vmatpush1.bf16.msra.mxu0 %v639
        %723 = vmatprep.subr.bf16.mxu0 0
        %724 = vmatpush1.bf16.msra.mxu0 0
        %725 = vmatprep.subr.bf16.mxu0 0
        %726 = vmatpush1.bf16.msra.mxu0 0
        %727 = vmatprep.subr.bf16.mxu0 0
        %728 = vmatpush1.bf16.msra.mxu0 0
        %729 = vmatprep.subr.bf16.mxu0 0
        %730 = vmatpush1.bf16.msra.mxu0 0
        %731 = vmatprep.subr.bf16.mxu0 0
        %732 = vmatpush1.bf16.msra.mxu0 0
        %733 = vmatprep.subr.bf16.mxu0 0
        %734 = vmatpush1.bf16.msra.mxu0 0
        %735 = vmatprep.subr.bf16.mxu0 0
        %736 = vmatpush1.bf16.msra.mxu0 0
        %737 = vmatprep.subr.bf16.mxu0 0
        %738 = vmatpush1.bf16.msra.mxu0 0
        %739 = vmatprep.mubr.bf16.mxu0 0
        %740 = vmatmul.mubr.bf16.gmra.mrb[0].mxu0 %v535
        %v741 = vpop.f32.mrb[0].mxu0
        %v742 = vadd.f32 0.0, %v741
        %v743 = vpop.f32.mrb[0].mxu0
        %v744 = vpop.f32.mrb[0].mxu0
        %v745 = vadd.f32 0.0, %v744
        %v746 = vpop.f32.mrb[0].mxu0
        %747 = vdwg.mxu0
        %v748 = vpack.c.bf16 %v703, %v699
        %v749 = vpack.c.bf16 %v705, %v701
        %v750 = vpack.c.bf16 %v745, %v742
        %vm751 = vcmask 523264
        %v753 = vsel %vm751, %v748, 0
        %v756 = vsel %vm751, %v749, 0
        %758 = vmatprep.subr.bf16.mxu0 0
        %759 = vmatpush1.bf16.xpose.msra.mxu0 %v756
        %760 = vmatprep.subr.bf16.mxu0 0
        %761 = vmatpush1.bf16.xpose.msra.mxu0 0
        %762 = vmatprep.subr.bf16.mxu0 0
        %763 = vmatpush1.bf16.xpose.msra.mxu0 0
        %764 = vmatprep.subr.bf16.mxu0 0
        %765 = vmatpush1.bf16.xpose.msra.mxu0 0
        %766 = vmatprep.subr.bf16.mxu0 0
        %767 = vmatpush1.bf16.xpose.msra.mxu0 0
        %768 = vmatprep.subr.bf16.mxu0 0
        %769 = vmatpush1.bf16.xpose.msra.mxu0 0
        %770 = vmatprep.subr.bf16.mxu0 0
        %771 = vmatpush1.bf16.xpose.msra.mxu0 0
        %772 = vmatprep.subr.bf16.mxu0 0
        %773 = vmatpush1.bf16.xpose.msra.mxu0 0
        %774 = vmatprep.subr.bf16.mxu0 0
        %775 = vmatpush1.bf16.xpose.msra.mxu0 0
        %776 = vmatprep.subr.bf16.mxu0 0
        %777 = vmatpush1.bf16.xpose.msra.mxu0 0
        %778 = vmatprep.subr.bf16.mxu0 0
        %779 = vmatpush1.bf16.xpose.msra.mxu0 0
        %780 = vmatprep.subr.bf16.mxu0 0
        %781 = vmatpush1.bf16.xpose.msra.mxu0 0
        %782 = vmatprep.subr.bf16.mxu0 0
        %783 = vmatpush1.bf16.xpose.msra.mxu0 0
        %784 = vmatprep.subr.bf16.mxu0 0
        %785 = vmatpush1.bf16.xpose.msra.mxu0 0
        %786 = vmatprep.subr.bf16.mxu0 0
        %787 = vmatpush1.bf16.xpose.msra.mxu0 0
        %788 = vmatprep.subr.bf16.mxu0 0
        %789 = vmatpush1.bf16.xpose.msra.mxu0 0
        %790 = vmatprep.mubr.bf16.mxu0 0
        %791 = vmatmul.mubr.bf16.gmra.mrb[0].mxu0 %v753
        %v792 = vpop.f32.mrb[0].mxu0
        %v793 = vadd.f32 0.0, %v792
        %v794 = vpop.f32.mrb[0].mxu0
        %v795 = vpop.f32.mrb[0].mxu0
        %v796 = vadd.f32 0.0, %v795
        %v797 = vpop.f32.mrb[0].mxu0
        %798 = vdwg.mxu0
        %vm799 = vcmask 130048
        %v800 = vsel %vm799, %v793, -inf
        %801 = vmax.xlane.f32.xlu0 %v800
        %v802 = vpop.xlane.xlu0 %801
        %v803 = vsel %vm799, %v796, -inf
        %804 = vmax.xlane.f32.xlu0 %v803
        %v805 = vpop.xlane.xlu0 %804
        %v806 = vsub.f32 %v793, %v802
        %v807 = vsub.f32 %v796, %v805
        %v808 = vmul.f32 %v806, 1.442695
        %v809 = vpow.pop %v808
        %v810 = vmul.f32 %v807, 1.442695
        %v811 = vpow.pop %v810
        %v812 = vsel %vm799, %v809, 0.0
        %813 = vadd.xlane.f32.xlu0 %v812
        %v814 = vpop.xlane.xlu0 %813
        %v815 = vsel %vm799, %v811, 0.0
        %816 = vadd.xlane.f32.xlu0 %v815
        %v817 = vpop.xlane.xlu0 %816
        %v818 = vrcp.pop %v814
        %v819 = vrcp.pop %v817
        %v820 = vmul.f32 %v809, %v818
        %v821 = vmul.f32 %v811, %v819
        %v822 = vpack.c.bf16 %v821, %v820
        %v824 = vsel %vm799, %v822, 0
        %826 = vmatprep.subr.bf16.mxu0 0
        %827 = vmatpush1.bf16.msra.mxu0 %v750
        %828 = vmatprep.subr.bf16.mxu0 0
        %829 = vmatpush1.bf16.msra.mxu0 0
        %830 = vmatprep.subr.bf16.mxu0 0
        %831 = vmatpush1.bf16.msra.mxu0 0
        %832 = vmatprep.subr.bf16.mxu0 0
        %833 = vmatpush1.bf16.msra.mxu0 0
        %834 = vmatprep.subr.bf16.mxu0 0
        %835 = vmatpush1.bf16.msra.mxu0 0
        %836 = vmatprep.subr.bf16.mxu0 0
        %837 = vmatpush1.bf16.msra.mxu0 0
        %838 = vmatprep.subr.bf16.mxu0 0
        %839 = vmatpush1.bf16.msra.mxu0 0
        %840 = vmatprep.subr.bf16.mxu0 0
        %841 = vmatpush1.bf16.msra.mxu0 0
        %842 = vmatprep.subr.bf16.mxu0 0
        %843 = vmatpush1.bf16.msra.mxu0 0
        %844 = vmatprep.subr.bf16.mxu0 0
        %845 = vmatpush1.bf16.msra.mxu0 0
        %846 = vmatprep.subr.bf16.mxu0 0
        %847 = vmatpush1.bf16.msra.mxu0 0
        %848 = vmatprep.subr.bf16.mxu0 0
        %849 = vmatpush1.bf16.msra.mxu0 0
        %850 = vmatprep.subr.bf16.mxu0 0
        %851 = vmatpush1.bf16.msra.mxu0 0
        %852 = vmatprep.subr.bf16.mxu0 0
        %853 = vmatpush1.bf16.msra.mxu0 0
        %854 = vmatprep.subr.bf16.mxu0 0
        %855 = vmatpush1.bf16.msra.mxu0 0
        %856 = vmatprep.subr.bf16.mxu0 0
        %857 = vmatpush1.bf16.msra.mxu0 0
        %858 = vmatprep.mubr.bf16.mxu0 0
        %859 = vmatmul.mubr.bf16.gmra.mrb[0].mxu0 %v824
        %v860 = vpop.f32.mrb[0].mxu0
        %v861 = vadd.f32 0.0, %v860
        %v862 = vpop.f32.mrb[0].mxu0
        %v863 = vpop.f32.mrb[0].mxu0
        %v864 = vadd.f32 0.0, %v863
        %v865 = vpop.f32.mrb[0].mxu0
        %866 = vdwg.mxu0
        %v867 = vpack.c.bf16 %v864, %v861
        %869 = vrot.lane.b32.xlu0 %v748, 64
        %v870 = vpop.permute.xlu0 %869
        %872 = vrot.lane.b32.xlu0 %v749, 64
        %v873 = vpop.permute.xlu0 %872
        %v875 = vsel %vm751, %v870, 0
        %v878 = vsel %vm751, %v873, 0
        %880 = vmatprep.subr.bf16.mxu0 0
        %881 = vmatpush1.bf16.xpose.msra.mxu0 %v878
        %882 = vmatprep.subr.bf16.mxu0 0
        %883 = vmatpush1.bf16.xpose.msra.mxu0 0
        %884 = vmatprep.subr.bf16.mxu0 0
        %885 = vmatpush1.bf16.xpose.msra.mxu0 0
        %886 = vmatprep.subr.bf16.mxu0 0
        %887 = vmatpush1.bf16.xpose.msra.mxu0 0
        %888 = vmatprep.subr.bf16.mxu0 0
        %889 = vmatpush1.bf16.xpose.msra.mxu0 0
        %890 = vmatprep.subr.bf16.mxu0 0
        %891 = vmatpush1.bf16.xpose.msra.mxu0 0
        %892 = vmatprep.subr.bf16.mxu0 0
        %893 = vmatpush1.bf16.xpose.msra.mxu0 0
        %894 = vmatprep.subr.bf16.mxu0 0
        %895 = vmatpush1.bf16.xpose.msra.mxu0 0
        %896 = vmatprep.subr.bf16.mxu0 0
        %897 = vmatpush1.bf16.xpose.msra.mxu0 0
        %898 = vmatprep.subr.bf16.mxu0 0
        %899 = vmatpush1.bf16.xpose.msra.mxu0 0
        %900 = vmatprep.subr.bf16.mxu0 0
        %901 = vmatpush1.bf16.xpose.msra.mxu0 0
        %902 = vmatprep.subr.bf16.mxu0 0
        %903 = vmatpush1.bf16.xpose.msra.mxu0 0
        %904 = vmatprep.subr.bf16.mxu0 0
        %905 = vmatpush1.bf16.xpose.msra.mxu0 0
        %906 = vmatprep.subr.bf16.mxu0 0
        %907 = vmatpush1.bf16.xpose.msra.mxu0 0
        %908 = vmatprep.subr.bf16.mxu0 0
        %909 = vmatpush1.bf16.xpose.msra.mxu0 0
        %910 = vmatprep.subr.bf16.mxu0 0
        %911 = vmatpush1.bf16.xpose.msra.mxu0 0
        %912 = vmatprep.mubr.bf16.mxu0 0
        %913 = vmatmul.mubr.bf16.gmra.mrb[0].mxu0 %v875
        %v914 = vpop.f32.mrb[0].mxu0
        %v915 = vadd.f32 0.0, %v914
        %v916 = vpop.f32.mrb[0].mxu0
        %v917 = vpop.f32.mrb[0].mxu0
        %v918 = vadd.f32 0.0, %v917
        %v919 = vpop.f32.mrb[0].mxu0
        %920 = vdwg.mxu0
        %v921 = vsel %vm799, %v915, -inf
        %922 = vmax.xlane.f32.xlu0 %v921
        %v923 = vpop.xlane.xlu0 %922
        %v924 = vsel %vm799, %v918, -inf
        %925 = vmax.xlane.f32.xlu0 %v924
        %v926 = vpop.xlane.xlu0 %925
        %v927 = vsub.f32 %v915, %v923
        %v928 = vsub.f32 %v918, %v926
        %v929 = vmul.f32 %v927, 1.442695
        %v930 = vpow.pop %v929
        %v931 = vmul.f32 %v928, 1.442695
        %v932 = vpow.pop %v931
        %v933 = vsel %vm799, %v930, 0.0
        %934 = vadd.xlane.f32.xlu0 %v933
        %v935 = vpop.xlane.xlu0 %934
        %v936 = vsel %vm799, %v932, 0.0
        %937 = vadd.xlane.f32.xlu0 %v936
        %v938 = vpop.xlane.xlu0 %937
        %v939 = vrcp.pop %v935
        %v940 = vrcp.pop %v938
        %v941 = vmul.f32 %v930, %v939
        %v942 = vmul.f32 %v932, %v940
        %v943 = vpack.c.bf16 %v942, %v941
        %945 = vrot.lane.b32.xlu0 %v750, 64
        %v946 = vpop.permute.xlu0 %945
        %v949 = vsel %vm799, %v943, 0
        %951 = vmatprep.subr.bf16.mxu0 0
        %952 = vmatpush1.bf16.msra.mxu0 %v946
        %953 = vmatprep.subr.bf16.mxu0 0
        %954 = vmatpush1.bf16.msra.mxu0 0
        %955 = vmatprep.subr.bf16.mxu0 0
        %956 = vmatpush1.bf16.msra.mxu0 0
        %957 = vmatprep.subr.bf16.mxu0 0
        %958 = vmatpush1.bf16.msra.mxu0 0
        %959 = vmatprep.subr.bf16.mxu0 0
        %960 = vmatpush1.bf16.msra.mxu0 0
        %961 = vmatprep.subr.bf16.mxu0 0
        %962 = vmatpush1.bf16.msra.mxu0 0
        %963 = vmatprep.subr.bf16.mxu0 0
        %964 = vmatpush1.bf16.msra.mxu0 0
        %965 = vmatprep.subr.bf16.mxu0 0
        %966 = vmatpush1.bf16.msra.mxu0 0
        %967 = vmatprep.subr.bf16.mxu0 0
        %968 = vmatpush1.bf16.msra.mxu0 0
        %969 = vmatprep.subr.bf16.mxu0 0
        %970 = vmatpush1.bf16.msra.mxu0 0
        %971 = vmatprep.subr.bf16.mxu0 0
        %972 = vmatpush1.bf16.msra.mxu0 0
        %973 = vmatprep.subr.bf16.mxu0 0
        %974 = vmatpush1.bf16.msra.mxu0 0
        %975 = vmatprep.subr.bf16.mxu0 0
        %976 = vmatpush1.bf16.msra.mxu0 0
        %977 = vmatprep.subr.bf16.mxu0 0
        %978 = vmatpush1.bf16.msra.mxu0 0
        %979 = vmatprep.subr.bf16.mxu0 0
        %980 = vmatpush1.bf16.msra.mxu0 0
        %981 = vmatprep.subr.bf16.mxu0 0
        %982 = vmatpush1.bf16.msra.mxu0 0
        %983 = vmatprep.mubr.bf16.mxu0 0
        %984 = vmatmul.mubr.bf16.gmra.mrb[0].mxu0 %v949
        %v985 = vpop.f32.mrb[0].mxu0
        %v986 = vadd.f32 0.0, %v985
        %v987 = vpop.f32.mrb[0].mxu0
        %v988 = vpop.f32.mrb[0].mxu0
        %v989 = vadd.f32 0.0, %v988
        %v990 = vpop.f32.mrb[0].mxu0
        %991 = vdwg.mxu0
        %v992 = vpack.c.bf16 %v989, %v986
        %994 = vrot.lane.b32.xlu0 %v992, 64
        %v995 = vpop.permute.xlu0 %994
        %v998 = vsel %vm751, %v867, %v995
        %v1016 = vunpack.c.l.b16 %v392
        %v1017 = vunpack.c.l.b16 %v393
        %v1018 = vunpack.c.l.b16 %v394
        %v1019 = vunpack.c.l.b16 %v395
        %v1020 = vunpack.c.l.b16 %v396
        %v1021 = vunpack.c.l.b16 %v397
        %v1022 = vunpack.c.l.b16 %v398
        %v1023 = vunpack.c.l.b16 %v399
        %v1024 = vunpack.c.l.b16 %v400
        %v1025 = vunpack.c.l.b16 %v401
        %v1026 = vunpack.c.l.b16 %v402
        %v1027 = vunpack.c.l.b16 %v403
        %v1028 = vunpack.c.l.b16 %v404
        %v1029 = vunpack.c.l.b16 %v405
        %v1030 = vunpack.c.l.b16 %v406
        %v1031 = vunpack.c.l.b16 %v407
        %v1032 = vpack.c.b16 %v1017, %v1016
        %v1033 = vpack.c.b16 %v1019, %v1018
        %v1034 = vpack.c.b16 %v1021, %v1020
        %v1035 = vpack.c.b16 %v1023, %v1022
        %v1036 = vpack.c.b16 %v1025, %v1024
        %v1037 = vpack.c.b16 %v1027, %v1026
        %v1038 = vpack.c.b16 %v1029, %v1028
        %v1039 = vpack.c.b16 %v1031, %v1030
        %1048 = vmatprep.subr.bf16.mxu0 0
        %1049 = vmatpush1.bf16.msra.mxu0 %v1032
        %1050 = vmatprep.subr.bf16.mxu0 0
        %1051 = vmatpush1.bf16.msra.mxu0 %v1033
        %1052 = vmatprep.subr.bf16.mxu0 0
        %1053 = vmatpush1.bf16.msra.mxu0 %v1034
        %1054 = vmatprep.subr.bf16.mxu0 0
        %1055 = vmatpush1.bf16.msra.mxu0 %v1035
        %1056 = vmatprep.subr.bf16.mxu0 0
        %1057 = vmatpush1.bf16.msra.mxu0 %v1036
        %1058 = vmatprep.subr.bf16.mxu0 0
        %1059 = vmatpush1.bf16.msra.mxu0 %v1037
        %1060 = vmatprep.subr.bf16.mxu0 0
        %1061 = vmatpush1.bf16.msra.mxu0 %v1038
        %1062 = vmatprep.subr.bf16.mxu0 0
        %1063 = vmatpush1.bf16.msra.mxu0 %v1039
        %1064 = vmatprep.subr.bf16.mxu0 0
        %1065 = vmatpush1.bf16.msra.mxu0 0
        %1066 = vmatprep.subr.bf16.mxu0 0
        %1067 = vmatpush1.bf16.msra.mxu0 0
        %1068 = vmatprep.subr.bf16.mxu0 0
        %1069 = vmatpush1.bf16.msra.mxu0 0
        %1070 = vmatprep.subr.bf16.mxu0 0
        %1071 = vmatpush1.bf16.msra.mxu0 0
        %1072 = vmatprep.subr.bf16.mxu0 0
        %1073 = vmatpush1.bf16.msra.mxu0 0
        %1074 = vmatprep.subr.bf16.mxu0 0
        %1075 = vmatpush1.bf16.msra.mxu0 0
        %1076 = vmatprep.subr.bf16.mxu0 0
        %1077 = vmatpush1.bf16.msra.mxu0 0
        %1078 = vmatprep.subr.bf16.mxu0 0
        %1079 = vmatpush1.bf16.msra.mxu0 0
        %1080 = vmatprep.mubr.bf16.mxu0 0
        %1081 = vmatmul.mubr.bf16.gmra.mrb[0].mxu0 %v998
        %v1082 = vpop.f32.mrb[0].mxu0
        %v1083 = vadd.f32 0.0, %v1082
        %v1084 = vpop.f32.mrb[0].mxu0
        %v1085 = vpop.f32.mrb[0].mxu0
        %v1086 = vadd.f32 0.0, %v1085
        %v1087 = vpop.f32.mrb[0].mxu0
        %1088 = vdwg.mxu0
        %v1089 = vadd.f32 %v356, %v1083
        %v1090 = vadd.f32 %v357, %v1086
        %1091 = vadd.xlane.f32.xlu0 %v1089
        %v1092 = vpop.xlane.xlu0 %1091
        %1093 = vadd.xlane.f32.xlu0 %v1090
        %v1094 = vpop.xlane.xlu0 %1093
        %v1095 = vmul.f32 %v1092, %v508
        %v1096 = vmul.f32 %v1094, %v508
        %v1097 = vsub.f32 %v1089, %v1095
        %v1098 = vsub.f32 %v1090, %v1096
        %v1099 = vmul.f32 %v1097, %v1097
        %v1100 = vmul.f32 %v1098, %v1098
        %1101 = vadd.xlane.f32.xlu0 %v1099
        %v1102 = vpop.xlane.xlu0 %1101
        %1103 = vadd.xlane.f32.xlu0 %v1100
        %v1104 = vpop.xlane.xlu0 %1103
        %v1105 = vmul.f32 %v1102, %v508
        %v1106 = vmul.f32 %v1104, %v508
        %v1107 = vadd.f32 %v1105, 1e-06
        %v1108 = vadd.f32 %v1106, 1e-06
        %v1109 = vrsqrt.pop %v1107
        %v1110 = vrsqrt.pop %v1108
        %v1111 = vmul.f32 %v1097, %v1109
        %v1112 = vmul.f32 %v1098, %v1110
        %v1114 = vlaneseq
        %v1115 = vshrl.u32 %v1114, 7
        %v1116 = vsub.s32 0, %v1115
        %v1117 = vrot.slane %v359, %v1116
        %v1119 = vmul.f32 %v1111, %v1117
        %v1120 = vmul.f32 %v1112, %v1117
        %v1121 = vpack.c.bf16 %v1120, %v1119
        %v1154 = vunpack.c.l.b16 %v408
        %v1155 = vunpack.c.h.b16 %v408
        %v1156 = vunpack.c.l.b16 %v409
        %v1157 = vunpack.c.h.b16 %v409
        %v1158 = vunpack.c.l.b16 %v410
        %v1159 = vunpack.c.h.b16 %v410
        %v1160 = vunpack.c.l.b16 %v411
        %v1161 = vunpack.c.h.b16 %v411
        %v1162 = vunpack.c.l.b16 %v412
        %v1163 = vunpack.c.h.b16 %v412
        %v1164 = vunpack.c.l.b16 %v413
        %v1165 = vunpack.c.h.b16 %v413
        %v1166 = vunpack.c.l.b16 %v414
        %v1167 = vunpack.c.h.b16 %v414
        %v1168 = vunpack.c.l.b16 %v415
        %v1169 = vunpack.c.h.b16 %v415
        %v1170 = vunpack.c.l.b16 %v416
        %v1171 = vunpack.c.h.b16 %v416
        %v1172 = vunpack.c.l.b16 %v417
        %v1173 = vunpack.c.h.b16 %v417
        %v1174 = vunpack.c.l.b16 %v418
        %v1175 = vunpack.c.h.b16 %v418
        %v1176 = vunpack.c.l.b16 %v419
        %v1177 = vunpack.c.h.b16 %v419
        %v1178 = vunpack.c.l.b16 %v420
        %v1179 = vunpack.c.h.b16 %v420
        %v1180 = vunpack.c.l.b16 %v421
        %v1181 = vunpack.c.h.b16 %v421
        %v1182 = vunpack.c.l.b16 %v422
        %v1183 = vunpack.c.h.b16 %v422
        %v1184 = vunpack.c.l.b16 %v423
        %v1185 = vunpack.c.h.b16 %v423
        %v1186 = vunpack.c.l.b16 %v424
        %v1187 = vunpack.c.h.b16 %v424
        %v1188 = vunpack.c.l.b16 %v425
        %v1189 = vunpack.c.h.b16 %v425
        %v1190 = vunpack.c.l.b16 %v426
        %v1191 = vunpack.c.h.b16 %v426
        %v1192 = vunpack.c.l.b16 %v427
        %v1193 = vunpack.c.h.b16 %v427
        %v1194 = vunpack.c.l.b16 %v428
        %v1195 = vunpack.c.h.b16 %v428
        %v1196 = vunpack.c.l.b16 %v429
        %v1197 = vunpack.c.h.b16 %v429
        %v1198 = vunpack.c.l.b16 %v430
        %v1199 = vunpack.c.h.b16 %v430
        %v1200 = vunpack.c.l.b16 %v431
        %v1201 = vunpack.c.h.b16 %v431
        %v1202 = vunpack.c.l.b16 %v432
        %v1203 = vunpack.c.h.b16 %v432
        %v1204 = vunpack.c.l.b16 %v433
        %v1205 = vunpack.c.h.b16 %v433
        %v1206 = vunpack.c.l.b16 %v434
        %v1207 = vunpack.c.h.b16 %v434
        %v1208 = vunpack.c.l.b16 %v435
        %v1209 = vunpack.c.h.b16 %v435
        %v1210 = vunpack.c.l.b16 %v436
        %v1211 = vunpack.c.h.b16 %v436
        %v1212 = vunpack.c.l.b16 %v437
        %v1213 = vunpack.c.h.b16 %v437
        %v1214 = vunpack.c.l.b16 %v438
        %v1215 = vunpack.c.h.b16 %v438
        %v1216 = vunpack.c.l.b16 %v439
        %v1217 = vunpack.c.h.b16 %v439
        %v1218 = vpack.c.b16 %v1158, %v1154
        %v1219 = vpack.c.b16 %v1159, %v1155
        %v1220 = vpack.c.b16 %v1160, %v1156
        %v1221 = vpack.c.b16 %v1161, %v1157
        %v1222 = vpack.c.b16 %v1166, %v1162
        %v1223 = vpack.c.b16 %v1167, %v1163
        %v1224 = vpack.c.b16 %v1168, %v1164
        %v1225 = vpack.c.b16 %v1169, %v1165
        %v1226 = vpack.c.b16 %v1174, %v1170
        %v1227 = vpack.c.b16 %v1175, %v1171
        %v1228 = vpack.c.b16 %v1176, %v1172
        %v1229 = vpack.c.b16 %v1177, %v1173
        %v1230 = vpack.c.b16 %v1182, %v1178
        %v1231 = vpack.c.b16 %v1183, %v1179
        %v1232 = vpack.c.b16 %v1184, %v1180
        %v1233 = vpack.c.b16 %v1185, %v1181
        %v1234 = vpack.c.b16 %v1190, %v1186
        %v1235 = vpack.c.b16 %v1191, %v1187
        %v1236 = vpack.c.b16 %v1192, %v1188
        %v1237 = vpack.c.b16 %v1193, %v1189
        %v1238 = vpack.c.b16 %v1198, %v1194
        %v1239 = vpack.c.b16 %v1199, %v1195
        %v1240 = vpack.c.b16 %v1200, %v1196
        %v1241 = vpack.c.b16 %v1201, %v1197
        %v1242 = vpack.c.b16 %v1206, %v1202
        %v1243 = vpack.c.b16 %v1207, %v1203
        %v1244 = vpack.c.b16 %v1208, %v1204
        %v1245 = vpack.c.b16 %v1209, %v1205
        %v1246 = vpack.c.b16 %v1214, %v1210
        %v1247 = vpack.c.b16 %v1215, %v1211
        %v1248 = vpack.c.b16 %v1216, %v1212
        %v1249 = vpack.c.b16 %v1217, %v1213
        %1282 = vmatprep.subr.bf16.mxu0 %v1219
        %1283 = vmatpush1.bf16.msra.mxu0 %v1218
        %1284 = vmatprep.subr.bf16.mxu0 %v1223
        %1285 = vmatpush1.bf16.msra.mxu0 %v1222
        %1286 = vmatprep.subr.bf16.mxu0 %v1227
        %1287 = vmatpush1.bf16.msra.mxu0 %v1226
        %1288 = vmatprep.subr.bf16.mxu0 %v1231
        %1289 = vmatpush1.bf16.msra.mxu0 %v1230
        %1290 = vmatprep.subr.bf16.mxu0 %v1235
        %1291 = vmatpush1.bf16.msra.mxu0 %v1234
        %1292 = vmatprep.subr.bf16.mxu0 %v1239
        %1293 = vmatpush1.bf16.msra.mxu0 %v1238
        %1294 = vmatprep.subr.bf16.mxu0 %v1243
        %1295 = vmatpush1.bf16.msra.mxu0 %v1242
        %1296 = vmatprep.subr.bf16.mxu0 %v1247
        %1297 = vmatpush1.bf16.msra.mxu0 %v1246
        %1298 = vmatprep.subr.bf16.mxu0 0
        %1299 = vmatpush1.bf16.msra.mxu0 0
        %1300 = vmatprep.subr.bf16.mxu0 0
        %1301 = vmatpush1.bf16.msra.mxu0 0
        %1302 = vmatprep.subr.bf16.mxu0 0
        %1303 = vmatpush1.bf16.msra.mxu0 0
        %1304 = vmatprep.subr.bf16.mxu0 0
        %1305 = vmatpush1.bf16.msra.mxu0 0
        %1306 = vmatprep.subr.bf16.mxu0 0
        %1307 = vmatpush1.bf16.msra.mxu0 0
        %1308 = vmatprep.subr.bf16.mxu0 0
        %1309 = vmatpush1.bf16.msra.mxu0 0
        %1310 = vmatprep.subr.bf16.mxu0 0
        %1311 = vmatpush1.bf16.msra.mxu0 0
        %1312 = vmatprep.subr.bf16.mxu0 0
        %1313 = vmatpush1.bf16.msra.mxu0 0
        %1314 = vmatprep.mubr.bf16.mxu0 0
        %1315 = vmatmul.mubr.bf16.gmra.mrb[0].mxu0 %v1121
        %v1316 = vpop.f32.mrb[0].mxu0
        %v1317 = vadd.f32 0.0, %v1316
        %v1318 = vpop.f32.mrb[0].mxu0
        %v1319 = vadd.f32 0.0, %v1318
        %v1320 = vpop.f32.mrb[0].mxu0
        %v1321 = vadd.f32 0.0, %v1320
        %v1322 = vpop.f32.mrb[0].mxu0
        %v1323 = vadd.f32 0.0, %v1322
        %1324 = vdwg.mxu0
        %1325 = vmatprep.subr.bf16.mxu0 %v1221
        %1326 = vmatpush1.bf16.msra.mxu0 %v1220
        %1327 = vmatprep.subr.bf16.mxu0 %v1225
        %1328 = vmatpush1.bf16.msra.mxu0 %v1224
        %1329 = vmatprep.subr.bf16.mxu0 %v1229
        %1330 = vmatpush1.bf16.msra.mxu0 %v1228
        %1331 = vmatprep.subr.bf16.mxu0 %v1233
        %1332 = vmatpush1.bf16.msra.mxu0 %v1232
        %1333 = vmatprep.subr.bf16.mxu0 %v1237
        %1334 = vmatpush1.bf16.msra.mxu0 %v1236
        %1335 = vmatprep.subr.bf16.mxu0 %v1241
        %1336 = vmatpush1.bf16.msra.mxu0 %v1240
        %1337 = vmatprep.subr.bf16.mxu0 %v1245
        %1338 = vmatpush1.bf16.msra.mxu0 %v1244
        %1339 = vmatprep.subr.bf16.mxu0 %v1249
        %1340 = vmatpush1.bf16.msra.mxu0 %v1248
        %1341 = vmatprep.subr.bf16.mxu0 0
        %1342 = vmatpush1.bf16.msra.mxu0 0
        %1343 = vmatprep.subr.bf16.mxu0 0
        %1344 = vmatpush1.bf16.msra.mxu0 0
        %1345 = vmatprep.subr.bf16.mxu0 0
        %1346 = vmatpush1.bf16.msra.mxu0 0
        %1347 = vmatprep.subr.bf16.mxu0 0
        %1348 = vmatpush1.bf16.msra.mxu0 0
        %1349 = vmatprep.subr.bf16.mxu0 0
        %1350 = vmatpush1.bf16.msra.mxu0 0
        %1351 = vmatprep.subr.bf16.mxu0 0
        %1352 = vmatpush1.bf16.msra.mxu0 0
        %1353 = vmatprep.subr.bf16.mxu0 0
        %1354 = vmatpush1.bf16.msra.mxu0 0
        %1355 = vmatprep.subr.bf16.mxu0 0
        %1356 = vmatpush1.bf16.msra.mxu0 0
        %1357 = vmatprep.mubr.bf16.mxu0 0
        %1358 = vmatmul.mubr.bf16.gmra.mrb[0].mxu0 %v1121
        %v1359 = vpop.f32.mrb[0].mxu0
        %v1360 = vadd.f32 0.0, %v1359
        %v1361 = vpop.f32.mrb[0].mxu0
        %v1362 = vadd.f32 0.0, %v1361
        %v1363 = vpop.f32.mrb[0].mxu0
        %v1364 = vadd.f32 0.0, %v1363
        %v1365 = vpop.f32.mrb[0].mxu0
        %v1366 = vadd.f32 0.0, %v1365
        %1367 = vdwg.mxu0
        %v1368 = vmul.f32 %v1317, 0.5
        %v1369 = vmul.f32 %v1319, 0.5
        %v1370 = vmul.f32 %v1360, 0.5
        %v1371 = vmul.f32 %v1362, 0.5
        %v1372 = vmul.f32 %v1321, 0.5
        %v1373 = vmul.f32 %v1323, 0.5
        %v1374 = vmul.f32 %v1364, 0.5
        %v1375 = vmul.f32 %v1366, 0.5
        %v1376 = vmul.f32 %v1317, 0.70710677
        %v1377 = vmul.f32 %v1319, 0.70710677
        %v1378 = vmul.f32 %v1360, 0.70710677
        %v1379 = vmul.f32 %v1362, 0.70710677
        %v1380 = vmul.f32 %v1321, 0.70710677
        %v1381 = vmul.f32 %v1323, 0.70710677
        %v1382 = vmul.f32 %v1364, 0.70710677
        %v1383 = vmul.f32 %v1366, 0.70710677
        %v1384 = verf.f32.pop %v1376
        %v1385 = verf.f32.pop %v1377
        %v1386 = verf.f32.pop %v1378
        %v1387 = verf.f32.pop %v1379
        %v1388 = verf.f32.pop %v1380
        %v1389 = verf.f32.pop %v1381
        %v1390 = verf.f32.pop %v1382
        %v1391 = verf.f32.pop %v1383
        %v1392 = vadd.f32 %v1384, 1.0
        %v1393 = vadd.f32 %v1385, 1.0
        %v1394 = vadd.f32 %v1386, 1.0
        %v1395 = vadd.f32 %v1387, 1.0
        %v1396 = vadd.f32 %v1388, 1.0
        %v1397 = vadd.f32 %v1389, 1.0
        %v1398 = vadd.f32 %v1390, 1.0
        %v1399 = vadd.f32 %v1391, 1.0
        %v1400 = vmul.f32 %v1368, %v1392
        %v1401 = vmul.f32 %v1369, %v1393
        %v1402 = vmul.f32 %v1370, %v1394
        %v1403 = vmul.f32 %v1371, %v1395
        %v1404 = vmul.f32 %v1372, %v1396
        %v1405 = vmul.f32 %v1373, %v1397
        %v1406 = vmul.f32 %v1374, %v1398
        %v1407 = vmul.f32 %v1375, %v1399
        %v1408 = vpack.c.bf16 %v1404, %v1400
        %v1409 = vpack.c.bf16 %v1405, %v1401
        %v1410 = vpack.c.bf16 %v1406, %v1402
        %v1411 = vpack.c.bf16 %v1407, %v1403
        %v1476 = vunpack.c.l.b16 %v440
        %v1477 = vunpack.c.l.b16 %v441
        %v1478 = vunpack.c.l.b16 %v442
        %v1479 = vunpack.c.l.b16 %v443
        %v1480 = vunpack.c.l.b16 %v444
        %v1481 = vunpack.c.l.b16 %v445
        %v1482 = vunpack.c.l.b16 %v446
        %v1483 = vunpack.c.l.b16 %v447
        %v1484 = vunpack.c.l.b16 %v448
        %v1485 = vunpack.c.l.b16 %v449
        %v1486 = vunpack.c.l.b16 %v450
        %v1487 = vunpack.c.l.b16 %v451
        %v1488 = vunpack.c.l.b16 %v452
        %v1489 = vunpack.c.l.b16 %v453
        %v1490 = vunpack.c.l.b16 %v454
        %v1491 = vunpack.c.l.b16 %v455
        %v1492 = vunpack.c.l.b16 %v456
        %v1493 = vunpack.c.l.b16 %v457
        %v1494 = vunpack.c.l.b16 %v458
        %v1495 = vunpack.c.l.b16 %v459
        %v1496 = vunpack.c.l.b16 %v460
        %v1497 = vunpack.c.l.b16 %v461
        %v1498 = vunpack.c.l.b16 %v462
        %v1499 = vunpack.c.l.b16 %v463
        %v1500 = vunpack.c.l.b16 %v464
        %v1501 = vunpack.c.l.b16 %v465
        %v1502 = vunpack.c.l.b16 %v466
        %v1503 = vunpack.c.l.b16 %v467
        %v1504 = vunpack.c.l.b16 %v468
        %v1505 = vunpack.c.l.b16 %v469
        %v1506 = vunpack.c.l.b16 %v470
        %v1507 = vunpack.c.l.b16 %v471
        %v1508 = vunpack.c.l.b16 %v472
        %v1509 = vunpack.c.l.b16 %v473
        %v1510 = vunpack.c.l.b16 %v474
        %v1511 = vunpack.c.l.b16 %v475
        %v1512 = vunpack.c.l.b16 %v476
        %v1513 = vunpack.c.l.b16 %v477
        %v1514 = vunpack.c.l.b16 %v478
        %v1515 = vunpack.c.l.b16 %v479
        %v1516 = vunpack.c.l.b16 %v480
        %v1517 = vunpack.c.l.b16 %v481
        %v1518 = vunpack.c.l.b16 %v482
        %v1519 = vunpack.c.l.b16 %v483
        %v1520 = vunpack.c.l.b16 %v484
        %v1521 = vunpack.c.l.b16 %v485
        %v1522 = vunpack.c.l.b16 %v486
        %v1523 = vunpack.c.l.b16 %v487
        %v1524 = vunpack.c.l.b16 %v488
        %v1525 = vunpack.c.l.b16 %v489
        %v1526 = vunpack.c.l.b16 %v490
        %v1527 = vunpack.c.l.b16 %v491
        %v1528 = vunpack.c.l.b16 %v492
        %v1529 = vunpack.c.l.b16 %v493
        %v1530 = vunpack.c.l.b16 %v494
        %v1531 = vunpack.c.l.b16 %v495
        %v1532 = vunpack.c.l.b16 %v496
        %v1533 = vunpack.c.l.b16 %v497
        %v1534 = vunpack.c.l.b16 %v498
        %v1535 = vunpack.c.l.b16 %v499
        %v1536 = vunpack.c.l.b16 %v500
        %v1537 = vunpack.c.l.b16 %v501
        %v1538 = vunpack.c.l.b16 %v502
        %v1539 = vunpack.c.l.b16 %v503
        %v1540 = vpack.c.b16 %v1477, %v1476
        %v1541 = vpack.c.b16 %v1479, %v1478
        %v1542 = vpack.c.b16 %v1481, %v1480
        %v1543 = vpack.c.b16 %v1483, %v1482
        %v1544 = vpack.c.b16 %v1485, %v1484
        %v1545 = vpack.c.b16 %v1487, %v1486
        %v1546 = vpack.c.b16 %v1489, %v1488
        %v1547 = vpack.c.b16 %v1491, %v1490
        %v1548 = vpack.c.b16 %v1493, %v1492
        %v1549 = vpack.c.b16 %v1495, %v1494
        %v1550 = vpack.c.b16 %v1497, %v1496
        %v1551 = vpack.c.b16 %v1499, %v1498
        %v1552 = vpack.c.b16 %v1501, %v1500
        %v1553 = vpack.c.b16 %v1503, %v1502
        %v1554 = vpack.c.b16 %v1505, %v1504
        %v1555 = vpack.c.b16 %v1507, %v1506
        %v1556 = vpack.c.b16 %v1509, %v1508
        %v1557 = vpack.c.b16 %v1511, %v1510
        %v1558 = vpack.c.b16 %v1513, %v1512
        %v1559 = vpack.c.b16 %v1515, %v1514
        %v1560 = vpack.c.b16 %v1517, %v1516
        %v1561 = vpack.c.b16 %v1519, %v1518
        %v1562 = vpack.c.b16 %v1521, %v1520
        %v1563 = vpack.c.b16 %v1523, %v1522
        %v1564 = vpack.c.b16 %v1525, %v1524
        %v1565 = vpack.c.b16 %v1527, %v1526
        %v1566 = vpack.c.b16 %v1529, %v1528
        %v1567 = vpack.c.b16 %v1531, %v1530
        %v1568 = vpack.c.b16 %v1533, %v1532
        %v1569 = vpack.c.b16 %v1535, %v1534
        %v1570 = vpack.c.b16 %v1537, %v1536
        %v1571 = vpack.c.b16 %v1539, %v1538
        %1604 = vmatprep.subr.bf16.mxu0 0
        %1605 = vmatpush1.bf16.msra.mxu0 %v1540
        %1606 = vmatprep.subr.bf16.mxu0 0
        %1607 = vmatpush1.bf16.msra.mxu0 %v1541
        %1608 = vmatprep.subr.bf16.mxu0 0
        %1609 = vmatpush1.bf16.msra.mxu0 %v1542
        %1610 = vmatprep.subr.bf16.mxu0 0
        %1611 = vmatpush1.bf16.msra.mxu0 %v1543
        %1612 = vmatprep.subr.bf16.mxu0 0
        %1613 = vmatpush1.bf16.msra.mxu0 %v1544
        %1614 = vmatprep.subr.bf16.mxu0 0
        %1615 = vmatpush1.bf16.msra.mxu0 %v1545
        %1616 = vmatprep.subr.bf16.mxu0 0
        %1617 = vmatpush1.bf16.msra.mxu0 %v1546
        %1618 = vmatprep.subr.bf16.mxu0 0
        %1619 = vmatpush1.bf16.msra.mxu0 %v1547
        %1620 = vmatprep.subr.bf16.mxu0 0
        %1621 = vmatpush1.bf16.msra.mxu0 %v1548
        %1622 = vmatprep.subr.bf16.mxu0 0
        %1623 = vmatpush1.bf16.msra.mxu0 %v1549
        %1624 = vmatprep.subr.bf16.mxu0 0
        %1625 = vmatpush1.bf16.msra.mxu0 %v1550
        %1626 = vmatprep.subr.bf16.mxu0 0
        %1627 = vmatpush1.bf16.msra.mxu0 %v1551
        %1628 = vmatprep.subr.bf16.mxu0 0
        %1629 = vmatpush1.bf16.msra.mxu0 %v1552
        %1630 = vmatprep.subr.bf16.mxu0 0
        %1631 = vmatpush1.bf16.msra.mxu0 %v1553
        %1632 = vmatprep.subr.bf16.mxu0 0
        %1633 = vmatpush1.bf16.msra.mxu0 %v1554
        %1634 = vmatprep.subr.bf16.mxu0 0
        %1635 = vmatpush1.bf16.msra.mxu0 %v1555
        %1636 = vmatprep.mubr.bf16.mxu0 %v1409
        %1637 = vmatmul.mubr.bf16.gmra.mrb[0].mxu0 %v1408
        %v1638 = vpop.f32.mrb[0].mxu0
        %v1639 = vadd.f32 0.0, %v1638
        %v1640 = vpop.f32.mrb[0].mxu0
        %v1641 = vpop.f32.mrb[0].mxu0
        %v1642 = vadd.f32 0.0, %v1641
        %v1643 = vpop.f32.mrb[0].mxu0
        %1644 = vdwg.mxu0
        %1645 = vmatprep.subr.bf16.mxu0 0
        %1646 = vmatpush1.bf16.msra.mxu0 %v1556
        %1647 = vmatprep.subr.bf16.mxu0 0
        %1648 = vmatpush1.bf16.msra.mxu0 %v1557
        %1649 = vmatprep.subr.bf16.mxu0 0
        %1650 = vmatpush1.bf16.msra.mxu0 %v1558
        %1651 = vmatprep.subr.bf16.mxu0 0
        %1652 = vmatpush1.bf16.msra.mxu0 %v1559
        %1653 = vmatprep.subr.bf16.mxu0 0
        %1654 = vmatpush1.bf16.msra.mxu0 %v1560
        %1655 = vmatprep.subr.bf16.mxu0 0
        %1656 = vmatpush1.bf16.msra.mxu0 %v1561
        %1657 = vmatprep.subr.bf16.mxu0 0
        %1658 = vmatpush1.bf16.msra.mxu0 %v1562
        %1659 = vmatprep.subr.bf16.mxu0 0
        %1660 = vmatpush1.bf16.msra.mxu0 %v1563
        %1661 = vmatprep.subr.bf16.mxu0 0
        %1662 = vmatpush1.bf16.msra.mxu0 %v1564
        %1663 = vmatprep.subr.bf16.mxu0 0
        %1664 = vmatpush1.bf16.msra.mxu0 %v1565
        %1665 = vmatprep.subr.bf16.mxu0 0
        %1666 = vmatpush1.bf16.msra.mxu0 %v1566
        %1667 = vmatprep.subr.bf16.mxu0 0
        %1668 = vmatpush1.bf16.msra.mxu0 %v1567
        %1669 = vmatprep.subr.bf16.mxu0 0
        %1670 = vmatpush1.bf16.msra.mxu0 %v1568
        %1671 = vmatprep.subr.bf16.mxu0 0
        %1672 = vmatpush1.bf16.msra.mxu0 %v1569
        %1673 = vmatprep.subr.bf16.mxu0 0
        %1674 = vmatpush1.bf16.msra.mxu0 %v1570
        %1675 = vmatprep.subr.bf16.mxu0 0
        %1676 = vmatpush1.bf16.msra.mxu0 %v1571
        %1677 = vmatprep.mubr.bf16.mxu0 %v1411
        %1678 = vmatmul.mubr.bf16.gmra.mrb[0].mxu0 %v1410
        %v1679 = vpop.f32.mrb[0].mxu0
        %v1680 = vadd.f32 %v1639, %v1679
        %v1681 = vpop.f32.mrb[0].mxu0
        %v1682 = vpop.f32.mrb[0].mxu0
        %v1683 = vadd.f32 %v1642, %v1682
        %v1684 = vpop.f32.mrb[0].mxu0
        %1685 = vdwg.mxu0
        %v1686 = vadd.f32 %v1089, %v1680
        %v1687 = vadd.f32 %v1090, %v1683
        %1688 = vst [vmem:[%s354] sm:$0xff] %v1686
        %1689 = vst [vmem:[%s354 + $0x8] sm:$0xff] %v1687
        %s1690 = sand.u32 %s186, 1
        %s1691 = scalar_lea.sflag [#allocation4], %s1690
        %s1692 = sand.u32 %s186, 1
        %s1693 = smul.addr %s1692, 16
        %s1694 = scalar_lea.vmem [#allocation11], %s1693
        // Predicated region
        $region69: #{tpu_custom_call.1} parent=47 // pred_check
          %p1695 = pneg %p196
        $region70: #{tpu_custom_call.1} parent=47 // pred_check_branch
          %1697 = sbr.rel (%p1695) target = $region72
        $region71: #{tpu_custom_call.1} parent=47 // pred_region
          %s1699 = ssub.s32 256, 256
          %1700 = vsyncadd %s1691, %s1699
          %s1701 = smul.addr %s26, 2
          %s1702 = smul.addr %s1701, 128
          %s1703 = scalar_lea.hbm %s7, %s1702
          %s1704 = sshll.u32 %s1694, 4
          %s1705 = int_to_ptr.vmem [resolvable:$true] %s1704
          %1710 = dma.vmem_to_hbm [thread:$0]  %s1705, 256, %s1703, %s1691, 128, 128, 8
        $region72: #{tpu_custom_call.1} parent=47 // pred_fallthru
          _
      $region48: #{tpu_custom_call.1} parent=5 // pred_fallthru
        _
      %p1711 = scmp.le.s32.totalorder 2, %s21
      // Predicated region
      $region73: #{tpu_custom_call.1} parent=5 // pred_check
        %p1712 = pneg %p1711
      $region74: #{tpu_custom_call.1} parent=5 // pred_check_branch
        %1714 = sbr.rel (%p1712) target = $region76
      $region75: #{tpu_custom_call.1} parent=5 // pred_region
        %s1715 = ssub.s32 %s21, 2
        // Predicated region
        $region77: #{tpu_custom_call.1} parent=75 // pred_check
          %p1716 = pneg %p202
        $region78: #{tpu_custom_call.1} parent=75 // pred_check_branch
          %1718 = sbr.rel (%p1716) target = $region80
        $region79: #{tpu_custom_call.1} parent=75 // pred_region
          %s1719 = sand.u32 %s187, 1
          %s1720 = scalar_lea.sflag [#allocation4], %s1719
          %s1721 = sand.u32 %s187, 1
          %s1722 = smul.addr %s1721, 16
          %s1723 = scalar_lea.vmem [#allocation11], %s1722
          %1724 = dma.done %s1720, 256
        $region80: #{tpu_custom_call.1} parent=75 // pred_fallthru
          _
      $region76: #{tpu_custom_call.1} parent=5 // pred_fallthru
        _
    $region6: #{tpu_custom_call.1} parent=1 // loop_footer
      %s25 = sadd.s32 1, %s21
    $region7: #{tpu_custom_call.1} parent=1 // loop_footer_branch
      %20 = sbr.rel target = $region3
    $region8: #{tpu_custom_call.1} parent=1 // loop_exit
      _
    %1725 = vsyncpa [#allocation3], 1
    %s1726 = scalar_lea.sflag [#allocation3], 1
    %1727 = vsyncpa %s1726, 1
    %1728 = vsyncpa [#allocation6], 1
    %1729 = vsyncpa [#allocation9], 1
    %1730 = vsyncpa [#allocation4], 1
    %s1731 = scalar_lea.sflag [#allocation4], 1
    %1732 = vsyncpa %s1731, 1

</llo_original>
